<compile_context>
chip_gen: v5e
topology: v5e:2x2
jax: 0.10.0
libtpu: 0.0.40
codegen_flags: <defaults>
</compile_context>

<pallas_src>
import functools
from typing import NamedTuple

import jax
import jax.numpy as jnp
from jax.experimental import pallas as pl
from jax.experimental.pallas import tpu as pltpu


# ----------------------------------------------------------------------------
# Kernel body: both matmuls + bias adds + LeakyReLU + ReLU fused per batch tile.
# ----------------------------------------------------------------------------
def generator_kernel(x_ref, w1_ref, b1_ref, w2_ref, b2_ref, o_ref):
    # Layer 1: Linear(2F -> F).  bf16 operands on the MXU, f32 accumulation.
    h = jnp.dot(x_ref[...], w1_ref[...], preferred_element_type=jnp.float32)
    h = h + b1_ref[...]                    # f32 bias broadcast over batch rows
    # LeakyReLU(0.2) == max(h, 0.2*h) for slope in (0,1); saves a compare+select.
    h = jnp.maximum(h, 0.2 * h)

    # Layer 2: Linear(F -> F) + ReLU.  Re-cast activations to the MXU dtype.
    y = jnp.dot(h.astype(w2_ref.dtype), w2_ref[...],
                preferred_element_type=jnp.float32)
    y = y + b2_ref[...]
    o_ref[...] = jnp.maximum(y, 0.0).astype(o_ref.dtype)


# ----------------------------------------------------------------------------
# Small helpers.
# ----------------------------------------------------------------------------
def _cdiv(a, b):
    return (a + b - 1) // b


def _round_up(n, m):
    return _cdiv(n, m) * m


def _pad2d(a, shape):
    pads = [(0, t - s) for s, t in zip(a.shape, shape)]
    if all(p == (0, 0) for p in pads):
        return a
    return jnp.pad(a, pads)


def _vmem_limit_bytes(frac=7 / 8):
    # Leave headroom below physical VMEM (128 MiB v5e/v6e, 64 MiB per-TC v7x).
    try:
        cap = int(pltpu.get_tpu_info().vmem_capacity_bytes)
    except Exception:
        cap = 64 * 1024 * 1024  # safe floor for every generation
    return int(cap * frac)


def _choose_batch_tile(batch, max_tile=512, min_grid_steps=2):
    """Pick a sublane-aligned batch tile that minimizes padding.

    n_tiles = max(ceil(B/max_tile), min_grid_steps) so both v7x TensorCores get
    work even for small B; bt only needs to be a multiple of 8, not 256.
    """
    b8 = _round_up(max(int(batch), 1), 8)
    n_tiles = max(_cdiv(b8, max_tile), int(min_grid_steps))
    bt = _round_up(_cdiv(b8, n_tiles), 8)
    bp = _round_up(b8, bt)
    return bt, bp


@functools.lru_cache(maxsize=1)
def _weight_pipeline_kwargs():
    """Feature-detect pipeline_mode=pl.Buffered(1) (single-buffered weights)."""
    if not hasattr(pl, "Buffered"):
        return {}
    try:
        pl.BlockSpec((8, 128), lambda i: (0, 0), pipeline_mode=pl.Buffered(1))
    except TypeError:
        return {}
    return {"pipeline_mode": pl.Buffered(1)}


# ----------------------------------------------------------------------------
# One-time parameter preparation (hoisted pad + bf16 cast).
# ----------------------------------------------------------------------------
class GeneratorParams(NamedTuple):
    w1p: jax.Array        # [F2p, Fp]  mxu dtype (bf16)
    b1p: jax.Array        # [1, Fp]    f32
    w2p: jax.Array        # [Fp, Fp]   mxu dtype (bf16)
    b2p: jax.Array        # [1, Fp]    f32
    in_features: int      # F  (unpadded)
    in_features2: int     # 2F (unpadded)


def prepare_params(w1, b1, w2, b2, *, mxu_dtype=jnp.bfloat16):
    """Pad feature dims to multiples of 128 and cast weights to the MXU dtype.

    Call ONCE at init and reuse across forward calls: this keeps the ~2*F^2
    f32->bf16 pad/cast traffic out of the per-call path.
    """
    w1 = jnp.asarray(w1)
    w2 = jnp.asarray(w2)
    b1 = jnp.asarray(b1).reshape(1, -1)
    b2 = jnp.asarray(b2).reshape(1, -1)
    f2, f = w1.shape
    assert w2.shape == (f, f), "w2 must be [in_features, in_features]"
    assert b1.shape[1] == f and b2.shape[1] == f, "bias shape mismatch"

    fp = _round_up(f, 128)
    f2p = _round_up(f2, 128)
    # Zero padding is exact: padded w1 cols / b1 lanes give h==0 there,
    # LeakyReLU(0)==0, padded w2 rows contribute 0, padded output cols are
    # sliced off in generator_forward.
    w1p = _pad2d(w1, (f2p, fp)).astype(mxu_dtype)
    w2p = _pad2d(w2, (fp, fp)).astype(mxu_dtype)
    b1p = _pad2d(b1, (1, fp)).astype(jnp.float32)
    b2p = _pad2d(b2, (1, fp)).astype(jnp.float32)
    return GeneratorParams(w1p, b1p, w2p, b2p, f, f2)


# ----------------------------------------------------------------------------
# Forward pass wrapper.
# ----------------------------------------------------------------------------
def generator_forward(x, params: GeneratorParams, *, max_batch_tile=512,
                      min_grid_steps=2, out_dtype=None):
    """Fused MLP forward.  `params` comes from prepare_params() (done once).

    out_dtype=jnp.bfloat16 selects the half-writeback output path (f32 epilogue,
    cast only at the final store).
    """
    x = jnp.asarray(x)
    B, F2 = x.shape
    assert F2 == params.in_features2, "x feature dim must equal 2*in_features"
    F = params.in_features
    F2p, Fp = params.w1p.shape
    mxu_dtype = params.w1p.dtype
    out_dtype = x.dtype if out_dtype is None else out_dtype

    # Batch tile: minimize padding, keep >=2 grid steps for v7x megacore.
    bt, Bp = _choose_batch_tile(B, max_tile=max_batch_tile,
                                min_grid_steps=min_grid_steps)
    xp = _pad2d(x, (Bp, F2p)).astype(mxu_dtype)

    grid = (Bp // bt,)
    out_itemsize = jnp.dtype(out_dtype).itemsize
    cost_est = pl.CostEstimate(
        flops=2 * Bp * Fp * (F2p + Fp),
        transcendentals=0,
        bytes_accessed=(xp.size * xp.dtype.itemsize
                        + params.w1p.size * params.w1p.dtype.itemsize
                        + params.w2p.size * params.w2p.dtype.itemsize
                        + params.b1p.size * params.b1p.dtype.itemsize
                        + params.b2p.size * params.b2p.dtype.itemsize
                        + Bp * Fp * out_itemsize),
    )
    vmem_limit = _vmem_limit_bytes()

    def run(res_kw):
        # Weights/biases never change across the grid (constant index_map);
        # single-buffer them when supported to halve their VMEM footprint.
        grid_spec = pltpu.PrefetchScalarGridSpec(
            num_scalar_prefetch=0,
            grid=grid,
            in_specs=[
                pl.BlockSpec((bt, F2p), lambda i: (i, 0)),              # x tile
                pl.BlockSpec((F2p, Fp), lambda i: (0, 0), **res_kw),    # w1 resident
                pl.BlockSpec((1, Fp), lambda i: (0, 0), **res_kw),      # b1
                pl.BlockSpec((Fp, Fp), lambda i: (0, 0), **res_kw),     # w2 resident
                pl.BlockSpec((1, Fp), lambda i: (0, 0), **res_kw),      # b2
            ],
            out_specs=pl.BlockSpec((bt, Fp), lambda i: (i, 0)),
        )
        return pl.pallas_call(
            generator_kernel,
            out_shape=jax.ShapeDtypeStruct((Bp, Fp), out_dtype),
            grid_spec=grid_spec,
            compiler_params=pltpu.CompilerParams(
                dimension_semantics=("parallel",),   # megacore-shardable grid
                vmem_limit_bytes=vmem_limit,
            ),
            cost_estimate=cost_est,
        )(xp, params.w1p, params.b1p, params.w2p, params.b2p)

    res_kw = _weight_pipeline_kwargs()
    if res_kw:
        try:
            out = run(res_kw)
        except TypeError:
            # Narrow API-compatibility fallback only (this JAX build's
            # pallas_call rejects pipeline_mode).  Genuine lowering / VMEM
            # errors are NOT swallowed here.
            out = run({})
    else:
        out = run({})

    # TODO(synk): for in_features large enough that bf16 w1+w2 approach the
    # v7x 64 MiB/TC VMEM limit (F >~ 2.8k), add a second grid axis tiling the
    # layer output columns (w1/w2 index_map -> (0, j), TN ~ 512-1024).
    # TODO(synk): on v7x only, evaluate fp8(e4m3) weights with per-column
    # scales folded into the f32 bias/epilogue for ~2x MXU throughput.
    return out[:B, :F]


# ----------------------------------------------------------------------------
# Deterministic init (mimics nn.Linear default: uniform +/- 1/sqrt(fan_in)).
# ----------------------------------------------------------------------------
def init_params(key, in_features, dtype=jnp.float32):
    k1, k2, k3, k4 = jax.random.split(key, 4)
    fan_in1 = 2 * in_features
    bound1 = 1.0 / jnp.sqrt(fan_in1)
    w1 = jax.random.uniform(k1, (fan_in1, in_features), dtype, -bound1, bound1)
    b1 = jax.random.uniform(k2, (1, in_features), dtype, -bound1, bound1)
    fan_in2 = in_features
    bound2 = 1.0 / jnp.sqrt(fan_in2)
    w2 = jax.random.uniform(k3, (fan_in2, in_features), dtype, -bound2, bound2)
    b2 = jax.random.uniform(k4, (1, in_features), dtype, -bound2, bound2)
    return w1, b1, w2, b2


def reference_forward(x, w1, b1, w2, b2, matmul_dtype=None):
    """Pure-JAX reference.  matmul_dtype=bf16 mirrors the kernel's MXU casts."""
    if matmul_dtype is not None:
        xm, w1m, w2m = (x.astype(matmul_dtype), w1.astype(matmul_dtype),
                        w2.astype(matmul_dtype))
    else:
        xm, w1m, w2m = x, w1, w2
    h = jnp.dot(xm, w1m, preferred_element_type=jnp.float32) + b1.reshape(1, -1)
    h = jnp.maximum(h, 0.2 * h)
    h2 = h.astype(matmul_dtype) if matmul_dtype is not None else h
    y = jnp.dot(h2, w2m, preferred_element_type=jnp.float32) + b2.reshape(1, -1)
    return jnp.maximum(y, 0.0).astype(x.dtype)


if __name__ == "__main__":
    # Small but representative shapes for Linear(2F -> F -> F):
    #   in_features=200 is (like the module default 1600) NOT a multiple of 128,
    #   exercising the lane-alignment padding; batch=300 now tiles as 2 x 152
    #   rows (Bp=304, ~1% pad) instead of 2 x 256 rows -> adaptive tiling and
    #   "parallel" megacore sharding are both exercised.
    in_features = 200
    batch = 300

    key = jax.random.PRNGKey(0)
    kx, kp = jax.random.split(key)
    x = jax.random.normal(kx, (batch, 2 * in_features), dtype=jnp.float32)
    w1, b1, w2, b2 = init_params(kp, in_features)

    # One-time weight pad + bf16 cast (hoisted out of the per-call path).
    params = prepare_params(w1, b1, w2, b2)

    out = generator_forward(x, params)
    out = jax.block_until_ready(out)
    assert out.shape == (batch, in_features)

    # Bit-compatible reference (same bf16 MXU inputs, f32 accumulate/epilogue).
    ref_bf16 = reference_forward(x, w1, b1, w2, b2, matmul_dtype=jnp.bfloat16)
    assert jnp.allclose(out, ref_bf16, atol=1e-3, rtol=1e-3), \
        "mismatch vs bf16-matmul reference"

    # Full-f32 reference: only difference is bf16 rounding of the MXU inputs.
    ref_f32 = reference_forward(x, w1, b1, w2, b2)
    assert jnp.allclose(out, ref_f32, atol=5e-2, rtol=5e-2), \
        "mismatch vs f32 reference"

    # bf16-output path (half the output writeback / double-buffer).
    out_bf16 = jax.block_until_ready(
        generator_forward(x, params, out_dtype=jnp.bfloat16))
    assert out_bf16.dtype == jnp.bfloat16 and out_bf16.shape == (batch, in_features)
    assert jnp.allclose(out_bf16.astype(jnp.float32), ref_bf16,
                        atol=2e-2, rtol=2e-2), "mismatch on bf16-output path"

    print("KERNEL_OK")
</pallas_src>

<mosaic_0001>
module attributes {stable_mosaic.version = 11 : i64} {
  func.func @generator_kernel(%arg0: i32, %arg1: memref<152x512xbf16, #tpu.memory_space<vmem>>, %arg2: memref<512x256xbf16, #tpu.memory_space<vmem>>, %arg3: memref<1x256xf32, #tpu.memory_space<vmem>>, %arg4: memref<256x256xbf16, #tpu.memory_space<vmem>>, %arg5: memref<1x256xf32, #tpu.memory_space<vmem>>, %arg6: memref<152x256xf32, #tpu.memory_space<vmem>>) attributes {dimension_semantics = [#tpu.dimension_semantics<parallel>], iteration_bounds = array<i64: 2>, scalar_prefetch = 0 : i64, scratch_operands = 0 : i64, tpu.core_type = #tpu.core_type<tc>, window_params = [{transform_indices = @transform_0, window_bounds = array<i64: 152, 512>}, {pipeline_mode = #tpu.pipeline_mode<synchronous>, transform_indices = @transform_1, window_bounds = array<i64: 512, 256>}, {pipeline_mode = #tpu.pipeline_mode<synchronous>, transform_indices = @transform_2, window_bounds = array<i64: 1, 256>}, {pipeline_mode = #tpu.pipeline_mode<synchronous>, transform_indices = @transform_3, window_bounds = array<i64: 256, 256>}, {pipeline_mode = #tpu.pipeline_mode<synchronous>, transform_indices = @transform_4, window_bounds = array<i64: 1, 256>}, {transform_indices = @transform_5, window_bounds = array<i64: 152, 256>}]} {
    %c0 = arith.constant 0 : index
    %c0_0 = arith.constant 0 : index
    %0 = vector.load %arg1[%c0, %c0_0] : memref<152x512xbf16, #tpu.memory_space<vmem>>, vector<152x512xbf16>
    %c0_1 = arith.constant 0 : index
    %c0_2 = arith.constant 0 : index
    %1 = vector.load %arg2[%c0_1, %c0_2] : memref<512x256xbf16, #tpu.memory_space<vmem>>, vector<512x256xbf16>
    %cst = arith.constant dense<0.000000e+00> : vector<152x256xf32>
    %2 = tpu.matmul %0, %1, %cst {dimension_numbers = #tpu.dot_dimension_numbers<[1], [0], [0], [1], [0, 0, 1, 1], [], []>} : vector<152x512xbf16>, vector<512x256xbf16>, vector<152x256xf32> -> vector<152x256xf32>
    %c0_3 = arith.constant 0 : index
    %c0_4 = arith.constant 0 : index
    %3 = vector.load %arg3[%c0_3, %c0_4] : memref<1x256xf32, #tpu.memory_space<vmem>>, vector<1x256xf32>
    %4 = vector.broadcast %3 : vector<1x256xf32> to vector<152x256xf32>
    %5 = arith.addf %2, %4 : vector<152x256xf32>
    %cst_5 = arith.constant 2.000000e-01 : f32
    %6 = vector.broadcast %cst_5 : f32 to vector<152x256xf32>
    %7 = arith.mulf %6, %5 : vector<152x256xf32>
    %8 = arith.maximumf %5, %7 : vector<152x256xf32>
    %9 = arith.truncf %8 : vector<152x256xf32> to vector<152x256xbf16>
    %c0_6 = arith.constant 0 : index
    %c0_7 = arith.constant 0 : index
    %10 = vector.load %arg4[%c0_6, %c0_7] : memref<256x256xbf16, #tpu.memory_space<vmem>>, vector<256x256xbf16>
    %cst_8 = arith.constant dense<0.000000e+00> : vector<152x256xf32>
    %11 = tpu.matmul %9, %10, %cst_8 {dimension_numbers = #tpu.dot_dimension_numbers<[1], [0], [0], [1], [0, 0, 1, 1], [], []>} : vector<152x256xbf16>, vector<256x256xbf16>, vector<152x256xf32> -> vector<152x256xf32>
    %c0_9 = arith.constant 0 : index
    %c0_10 = arith.constant 0 : index
    %12 = vector.load %arg5[%c0_9, %c0_10] : memref<1x256xf32, #tpu.memory_space<vmem>>, vector<1x256xf32>
    %13 = vector.broadcast %12 : vector<1x256xf32> to vector<152x256xf32>
    %14 = arith.addf %11, %13 : vector<152x256xf32>
    %cst_11 = arith.constant 0.000000e+00 : f32
    %15 = vector.broadcast %cst_11 : f32 to vector<152x256xf32>
    %16 = arith.maximumf %14, %15 : vector<152x256xf32>
    %c0_12 = arith.constant 0 : index
    %c0_13 = arith.constant 0 : index
    %17 = vector.load %arg6[%c0_12, %c0_13] : memref<152x256xf32, #tpu.memory_space<vmem>>, vector<152x256xf32>
    tpu.vector_store %arg6[%c0_12, %c0_13], %16 {strides = array<i32>} : memref<152x256xf32, #tpu.memory_space<vmem>>, vector<152x256xf32>,
    return
  }
  func.func @transform_0(%arg0: i32) -> (i32, i32) {
    %c0_i32 = arith.constant 0 : i32
    %c0_i32_0 = arith.constant 0 : i32
    return %arg0, %c0_i32 : i32, i32
  }
  func.func @transform_1(%arg0: i32) -> (i32, i32) {
    %c0_i32 = arith.constant 0 : i32
    %c0_i32_0 = arith.constant 0 : i32
    %c0_i32_1 = arith.constant 0 : i32
    return %c0_i32, %c0_i32_0 : i32, i32
  }
  func.func @transform_2(%arg0: i32) -> (i32, i32) {
    %c0_i32 = arith.constant 0 : i32
    %c0_i32_0 = arith.constant 0 : i32
    %c0_i32_1 = arith.constant 0 : i32
    return %c0_i32, %c0_i32_0 : i32, i32
  }
  func.func @transform_3(%arg0: i32) -> (i32, i32) {
    %c0_i32 = arith.constant 0 : i32
    %c0_i32_0 = arith.constant 0 : i32
    %c0_i32_1 = arith.constant 0 : i32
    return %c0_i32, %c0_i32_0 : i32, i32
  }
  func.func @transform_4(%arg0: i32) -> (i32, i32) {
    %c0_i32 = arith.constant 0 : i32
    %c0_i32_0 = arith.constant 0 : i32
    %c0_i32_1 = arith.constant 0 : i32
    return %c0_i32, %c0_i32_0 : i32, i32
  }
  func.func @transform_5(%arg0: i32) -> (i32, i32) {
    %c0_i32 = arith.constant 0 : i32
    %c0_i32_0 = arith.constant 0 : i32
    return %arg0, %c0_i32 : i32, i32
  }
}

</mosaic_0001>

<llo_original>
// kernel: tpu_custom_call.1
$region0: #{tpu_custom_call.1}
  #allocation0 [shape = 'u32[]', space=smem, size = 0x4, offset = 0x4, fixed_abs, tag = 'smem constant byte address 0x4 - core index']
  #allocation1 [shape = 'u32[72,128]{1,0:T(1,128)}', space=vmem, size = 0x9000, scoped, tag = 'internal scratch']
  %s0 = inlined_call_operand.hbm [shape: bf16[304,512], index: 0, kind: input, shape index: {}]
  %s1 = inlined_call_operand.hbm [shape: bf16[512,256], index: 1, kind: input, shape index: {}]
  %s2 = inlined_call_operand.hbm [shape: f32[1,256], index: 2, kind: input, shape index: {}]
  %s3 = inlined_call_operand.hbm [shape: bf16[256,256], index: 3, kind: input, shape index: {}]
  %s4 = inlined_call_operand.vmem [shape: f32[1,256], index: 4, kind: input, shape index: {}]
  %s5 = inlined_call_operand.hbm [shape: f32[304,256], index: 5, kind: output, shape index: {}]
  %s6 = sld [smem:[#allocation0]]
  $region69: #{tpu_custom_call.1} parent=0
    _
  %s8 = ssub.s32 1, %s6
  %s9 = scalar_select 0, %s8, %s6
  $region1: #{tpu_custom_call.1} parent=0
    #allocation2 [shape = 'u8[311296]{0}', space=vmem, size = 0x4c000, scoped, tag = 'input window, operand 0']
    #allocation3 [shape = 's32[2]{0}', space=sflag, size = 0x8, scoped, tag = 'scoped memory for tpu_custom_call.1']
    #allocation4 [shape = 's32[2]{0}', space=sflag, size = 0x8, scoped, tag = 'scoped memory for tpu_custom_call.1']
    #allocation5 [shape = 'u8[262144]{0}', space=vmem, size = 0x40000, scoped, tag = 'input window, operand 1, single buffered']
    #allocation6 [shape = 's32[1]{0}', space=sflag, size = 0x4, scoped, tag = 'scoped memory for tpu_custom_call.1']
    #allocation7 [shape = 'u8[1024]{0}', space=vmem, size = 0x400, scoped, tag = 'input window, operand 2, single buffered']
    #allocation8 [shape = 'u8[131072]{0}', space=vmem, size = 0x20000, scoped, tag = 'input window, operand 3, single buffered']
    #allocation9 [shape = 's32[1]{0}', space=sflag, size = 0x4, scoped, tag = 'scoped memory for tpu_custom_call.1']
    #allocation10 [shape = 'u8[311296]{0}', space=vmem, size = 0x4c000, scoped, tag = 'output window, operand 0']
    %10 = vsyncpa [#allocation3], 0
    %s11 = scalar_lea.sflag [#allocation3], 1
    %12 = vsyncpa %s11, 0
    %13 = vsyncpa [#allocation6], 0
    %14 = vsyncpa [#allocation9], 0
    %15 = vsyncpa [#allocation4], 0
    %s16 = scalar_lea.sflag [#allocation4], 1
    %17 = vsyncpa %s16, 0
    loop: start=0, step=1, limit=4
    $region2: #{tpu_custom_call.1} parent=1 // loop_pre_header
      _
    $region3: #{tpu_custom_call.1} parent=1 // loop_header
      %s19 = sphi 0, %s23
      %p20 = scmp.ge.s32.totalorder %s19, 4
      %s29 = sphi 0, %s31
      %s32 = sphi 0, %s29
      %s33 = sphi 0, %s32
      %s49 = sphi 0, %s33
      %s53 = sphi 0, %s53
      %s55 = sphi 0, %s53
      %s56 = sphi 0, %s55
      %s70 = sphi 0, %s56
      %s74 = sphi 0, %s74
      %s76 = sphi 0, %s74
      %s77 = sphi 0, %s76
      %s91 = sphi 0, %s77
      %s95 = sphi 0, %s95
      %s97 = sphi 0, %s95
      %s98 = sphi 0, %s97
      %s112 = sphi 0, %s98
      %s116 = sphi 0, %s116
      %s118 = sphi 0, %s116
      %s119 = sphi 0, %s118
      %s133 = sphi 0, %s119
      %s139 = sphi 0, %s141
      %s142 = sphi 0, %s139
      %s143 = sphi 0, %s142
      %s159 = sphi 0, %s143
    $region4: #{tpu_custom_call.1} parent=1 // loop_header_branch
      %22 = sbr.rel (%p20) target = $region8
    $region5: #{tpu_custom_call.1} parent=1 // loop_body
      %s24 = ssub.s32 %s19, 1
      %s25 = ssub.s32 %s19, 2
      %s26 = sadd.s32 %s19, 1
      %s27 = ssub.s32 %s19, %s26
      %p28 = scmp.eq.s32.totalorder %s27, 0
      %s30 = sadd.s32 %s29, 1
      %s31 = scalar_select %p28, %s29, %s30
      %p34 = pneg %p28
      %p35 = scmp.eq.s32.totalorder %s19, 1
      %p36 = por %p34, %p35
      %p37 = scmp.ne.s32.totalorder %s29, %s32
      %p38 = scmp.eq.s32.totalorder %s19, 0
      %p39 = por %p37, %p38
      %p40 = scmp.ne.s32.totalorder %s29, %s32
      %p41 = scmp.eq.s32.totalorder %s24, 1
      %p42 = por %p40, %p41
      %p43 = scmp.ne.s32.totalorder %s32, %s33
      %p44 = scmp.eq.s32.totalorder %s24, 0
      %p45 = por %p43, %p44
      %p46 = scmp.ne.s32.totalorder %s32, %s33
      %p47 = scmp.eq.s32.totalorder %s25, 1
      %p48 = por %p46, %p47
      %p50 = scmp.ne.s32.totalorder %s33, %s49
      %p51 = scmp.eq.s32.totalorder %s25, 0
      %p52 = por %p50, %p51
      %s54 = sadd.s32 %s53, 1
      %p57 = scmp.eq.s32.totalorder %s19, 1
      %p58 = scmp.ne.s32.totalorder %s53, %s55
      %p59 = scmp.eq.s32.totalorder %s19, 0
      %p60 = por %p58, %p59
      %p61 = scmp.ne.s32.totalorder %s53, %s55
      %p62 = scmp.eq.s32.totalorder %s24, 1
      %p63 = por %p61, %p62
      %p64 = scmp.ne.s32.totalorder %s55, %s56
      %p65 = scmp.eq.s32.totalorder %s24, 0
      %p66 = por %p64, %p65
      %p67 = scmp.ne.s32.totalorder %s55, %s56
      %p68 = scmp.eq.s32.totalorder %s25, 1
      %p69 = por %p67, %p68
      %p71 = scmp.ne.s32.totalorder %s56, %s70
      %p72 = scmp.eq.s32.totalorder %s25, 0
      %p73 = por %p71, %p72
      %s75 = sadd.s32 %s74, 1
      %p78 = scmp.eq.s32.totalorder %s19, 1
      %p79 = scmp.ne.s32.totalorder %s74, %s76
      %p80 = scmp.eq.s32.totalorder %s19, 0
      %p81 = por %p79, %p80
      %p82 = scmp.ne.s32.totalorder %s74, %s76
      %p83 = scmp.eq.s32.totalorder %s24, 1
      %p84 = por %p82, %p83
      %p85 = scmp.ne.s32.totalorder %s76, %s77
      %p86 = scmp.eq.s32.totalorder %s24, 0
      %p87 = por %p85, %p86
      %p88 = scmp.ne.s32.totalorder %s76, %s77
      %p89 = scmp.eq.s32.totalorder %s25, 1
      %p90 = por %p88, %p89
      %p92 = scmp.ne.s32.totalorder %s77, %s91
      %p93 = scmp.eq.s32.totalorder %s25, 0
      %p94 = por %p92, %p93
      %s96 = sadd.s32 %s95, 1
      %p99 = scmp.eq.s32.totalorder %s19, 1
      %p100 = scmp.ne.s32.totalorder %s95, %s97
      %p101 = scmp.eq.s32.totalorder %s19, 0
      %p102 = por %p100, %p101
      %p103 = scmp.ne.s32.totalorder %s95, %s97
      %p104 = scmp.eq.s32.totalorder %s24, 1
      %p105 = por %p103, %p104
      %p106 = scmp.ne.s32.totalorder %s97, %s98
      %p107 = scmp.eq.s32.totalorder %s24, 0
      %p108 = por %p106, %p107
      %p109 = scmp.ne.s32.totalorder %s97, %s98
      %p110 = scmp.eq.s32.totalorder %s25, 1
      %p111 = por %p109, %p110
      %p113 = scmp.ne.s32.totalorder %s98, %s112
      %p114 = scmp.eq.s32.totalorder %s25, 0
      %p115 = por %p113, %p114
      %s117 = sadd.s32 %s116, 1
      %p120 = scmp.eq.s32.totalorder %s19, 1
      %p121 = scmp.ne.s32.totalorder %s116, %s118
      %p122 = scmp.eq.s32.totalorder %s19, 0
      %p123 = por %p121, %p122
      %p124 = scmp.ne.s32.totalorder %s116, %s118
      %p125 = scmp.eq.s32.totalorder %s24, 1
      %p126 = por %p124, %p125
      %p127 = scmp.ne.s32.totalorder %s118, %s119
      %p128 = scmp.eq.s32.totalorder %s24, 0
      %p129 = por %p127, %p128
      %p130 = scmp.ne.s32.totalorder %s118, %s119
      %p131 = scmp.eq.s32.totalorder %s25, 1
      %p132 = por %p130, %p131
      %p134 = scmp.ne.s32.totalorder %s119, %s133
      %p135 = scmp.eq.s32.totalorder %s25, 0
      %p136 = por %p134, %p135
      %s137 = ssub.s32 %s19, %s26
      %p138 = scmp.eq.s32.totalorder %s137, 0
      %s140 = sadd.s32 %s139, 1
      %s141 = scalar_select %p138, %s139, %s140
      %p144 = pneg %p138
      %p145 = scmp.eq.s32.totalorder %s19, 1
      %p146 = por %p144, %p145
      %p147 = scmp.ne.s32.totalorder %s139, %s142
      %p148 = scmp.eq.s32.totalorder %s19, 0
      %p149 = por %p147, %p148
      %p150 = scmp.ne.s32.totalorder %s139, %s142
      %p151 = scmp.eq.s32.totalorder %s24, 1
      %p152 = por %p150, %p151
      %p153 = scmp.ne.s32.totalorder %s142, %s143
      %p154 = scmp.eq.s32.totalorder %s24, 0
      %p155 = por %p153, %p154
      %p156 = scmp.ne.s32.totalorder %s142, %s143
      %p157 = scmp.eq.s32.totalorder %s25, 1
      %p158 = por %p156, %p157
      %p160 = scmp.ne.s32.totalorder %s143, %s159
      %p161 = scmp.eq.s32.totalorder %s25, 0
      %p162 = por %p160, %p161
      %p163 = scmp.le.s32.totalorder 1, %s19
      %p164 = scmp.lt.s32.totalorder %s19, 3
      %p165 = pnand %p163, %p164
      %p166 = pneg %p165
      // Predicated region
      $region9: #{tpu_custom_call.1} parent=5 // pred_check
        _
      $region10: #{tpu_custom_call.1} parent=5 // pred_check_branch
        %168 = sbr.rel (%p165) target = $region12
      $region11: #{tpu_custom_call.1} parent=5 // pred_region
        %s169 = ssub.s32 %s19, 1
        // Predicated region
        $region13: #{tpu_custom_call.1} parent=11 // pred_check
          %p170 = pneg %p66
        $region14: #{tpu_custom_call.1} parent=11 // pred_check_branch
          %172 = sbr.rel (%p170) target = $region16
        $region15: #{tpu_custom_call.1} parent=11 // pred_region
          %174 = vsyncadd [#allocation6], 0
          %s175 = sshll.u32 %s1, 4
          %s176 = int_to_ptr.hbm [resolvable:$true] %s175
          %s177 = sshll.u32 [#allocation5], 4
          %s178 = int_to_ptr.vmem [resolvable:$true] %s177
          %183 = dma.hbm_to_vmem [thread:$0]  %s176, 8192, %s178, [#allocation6], 128, 128, 8
        $region16: #{tpu_custom_call.1} parent=11 // pred_fallthru
          _
        // Predicated region
        $region17: #{tpu_custom_call.1} parent=11 // pred_check
          %p184 = pneg %p87
        $region18: #{tpu_custom_call.1} parent=11 // pred_check_branch
          %186 = sbr.rel (%p184) target = $region20
        $region19: #{tpu_custom_call.1} parent=11 // pred_region
          %188 = vsyncadd [#allocation6], 0
          %s190 = sshll.u32 %s2, 4
          %s191 = int_to_ptr.hbm [resolvable:$true] %s190
          %s192 = sshll.u32 [#allocation7], 4
          %s193 = int_to_ptr.vmem [resolvable:$true] %s192
          %195 = dma.hbm_to_vmem [thread:$0]  %s191, 32, %s193, [#allocation6]
        $region20: #{tpu_custom_call.1} parent=11 // pred_fallthru
          _
        // Predicated region
        $region21: #{tpu_custom_call.1} parent=11 // pred_check
          %p196 = pneg %p108
        $region22: #{tpu_custom_call.1} parent=11 // pred_check_branch
          %198 = sbr.rel (%p196) target = $region24
        $region23: #{tpu_custom_call.1} parent=11 // pred_region
          %200 = vsyncadd [#allocation9], 0
          %s201 = sshll.u32 %s3, 4
          %s202 = int_to_ptr.hbm [resolvable:$true] %s201
          %s203 = sshll.u32 [#allocation8], 4
          %s204 = int_to_ptr.vmem [resolvable:$true] %s203
          %209 = dma.hbm_to_vmem [thread:$0]  %s202, 4096, %s204, [#allocation9], 128, 128, 8
        $region24: #{tpu_custom_call.1} parent=11 // pred_fallthru
          _
        // Predicated region
        $region25: #{tpu_custom_call.1} parent=11 // pred_check
          %p210 = pneg %p129
        $region26: #{tpu_custom_call.1} parent=11 // pred_check_branch
          %212 = sbr.rel (%p210) target = $region28
        $region27: #{tpu_custom_call.1} parent=11 // pred_region
          _
        $region28: #{tpu_custom_call.1} parent=11 // pred_fallthru
          _
      $region12: #{tpu_custom_call.1} parent=5 // pred_fallthru
        _
      %p213 = scmp.lt.s32.totalorder %s19, 2
      // Predicated region
      $region29: #{tpu_custom_call.1} parent=5 // pred_check
        %p214 = pneg %p213
      $region30: #{tpu_custom_call.1} parent=5 // pred_check_branch
        %216 = sbr.rel (%p214) target = $region32
      $region31: #{tpu_custom_call.1} parent=5 // pred_region
        // Predicated region
        $region33: #{tpu_custom_call.1} parent=31 // pred_check
          %p217 = pneg %p39
        $region34: #{tpu_custom_call.1} parent=31 // pred_check_branch
          %219 = sbr.rel (%p217) target = $region36
        $region35: #{tpu_custom_call.1} parent=31 // pred_region
          %s220 = sand.u32 %s29, 1
          %s221 = scalar_lea.sflag [#allocation3], %s220
          %s222 = sand.u32 %s29, 1
          %s223 = smul.addr %s222, 304
          %s224 = scalar_lea.vmem [#allocation2], %s223
          %s225 = smul.u32 19, %s19
          %227 = vsyncadd %s221, 0
          %s228 = smul.addr %s225, 4
          %s229 = smul.addr %s228, 4
          %s230 = scalar_lea.hbm %s0, %s229
          %s231 = sshll.u32 %s230, 4
          %s232 = int_to_ptr.hbm [resolvable:$true] %s231
          %s233 = sshll.u32 %s224, 4
          %s234 = int_to_ptr.vmem [resolvable:$true] %s233
          %239 = dma.hbm_to_vmem [thread:$0]  %s232, 4864, %s234, %s221, 256, 256, 16
        $region36: #{tpu_custom_call.1} parent=31 // pred_fallthru
          _
      $region32: #{tpu_custom_call.1} parent=5 // pred_fallthru
        _
      %p240 = scmp.le.s32.totalorder 1, %s19
      %p241 = scmp.lt.s32.totalorder %s19, 3
      %p242 = pnand %p240, %p241
      %p243 = pneg %p242
      // Predicated region
      $region37: #{tpu_custom_call.1} parent=5 // pred_check
        _
      $region38: #{tpu_custom_call.1} parent=5 // pred_check_branch
        %245 = sbr.rel (%p242) target = $region40
      $region39: #{tpu_custom_call.1} parent=5 // pred_region
        %s246 = ssub.s32 %s19, 1
        %s247 = sand.u32 %s32, 1
        %s248 = scalar_lea.sflag [#allocation3], %s247
        %s249 = sand.u32 %s32, 1
        %s250 = smul.addr %s249, 304
        %s251 = scalar_lea.vmem [#allocation2], %s250
        // Predicated region
        $region41: #{tpu_custom_call.1} parent=39 // pred_check
          %p252 = pneg %p45
        $region42: #{tpu_custom_call.1} parent=39 // pred_check_branch
          %254 = sbr.rel (%p252) target = $region44
        $region43: #{tpu_custom_call.1} parent=39 // pred_region
          %256 = dma.done %s248, 4864
        $region44: #{tpu_custom_call.1} parent=39 // pred_fallthru
          _
        // Predicated region
        $region45: #{tpu_custom_call.1} parent=39 // pred_check
          %p257 = pneg %p66
        $region46: #{tpu_custom_call.1} parent=39 // pred_check_branch
          %259 = sbr.rel (%p257) target = $region48
        $region47: #{tpu_custom_call.1} parent=39 // pred_region
          %261 = dma.done [#allocation6], 8192
        $region48: #{tpu_custom_call.1} parent=39 // pred_fallthru
          _
        // Predicated region
        $region49: #{tpu_custom_call.1} parent=39 // pred_check
          %p262 = pneg %p87
        $region50: #{tpu_custom_call.1} parent=39 // pred_check_branch
          %264 = sbr.rel (%p262) target = $region52
        $region51: #{tpu_custom_call.1} parent=39 // pred_region
          %266 = dma.done [#allocation6], 32
        $region52: #{tpu_custom_call.1} parent=39 // pred_fallthru
          _
        // Predicated region
        $region53: #{tpu_custom_call.1} parent=39 // pred_check
          %p267 = pneg %p108
        $region54: #{tpu_custom_call.1} parent=39 // pred_check_branch
          %269 = sbr.rel (%p267) target = $region56
        $region55: #{tpu_custom_call.1} parent=39 // pred_region
          %271 = dma.done [#allocation9], 4096
        $region56: #{tpu_custom_call.1} parent=39 // pred_fallthru
          _
        %s272 = sand.u32 %s32, 1
        %s273 = scalar_lea.sflag [#allocation3], %s272
        %s274 = sand.u32 %s32, 1
        %s275 = smul.addr %s274, 304
        %s276 = scalar_lea.vmem [#allocation2], %s275
        %p277 = pneg %p45
        %p278 = pneg %p42
        %p279 = pneg %p66
        %p280 = pneg %p63
        %p281 = pneg %p87
        %p282 = pneg %p84
        %p283 = pneg %p108
        %p284 = pneg %p105
        %p285 = pneg %p129
        %p286 = pneg %p126
        %p287 = pneg %p155
        %p288 = pneg %p152
        %s289 = sand.u32 %s142, 1
        %s290 = scalar_lea.sflag [#allocation4], %s289
        %s291 = sand.u32 %s142, 1
        %s292 = smul.addr %s291, 304
        %s293 = scalar_lea.vmem [#allocation10], %s292
        %s294 = smul.u32 19, %s24
        %s295 = smul.u32 19, %s24
        %v296 = vld [vmem:[%s251] sm:$0xff]
        %v297 = vld [vmem:[%s251 + $0x8] sm:$0xff]
        %v298 = vld [vmem:[%s251 + $0x10] sm:$0xff]
        %v299 = vld [vmem:[%s251 + $0x18] sm:$0xff]
        %v300 = vld [vmem:[%s251 + $0x20] sm:$0xff]
        %v301 = vld [vmem:[%s251 + $0x28] sm:$0xff]
        %v302 = vld [vmem:[%s251 + $0x30] sm:$0xff]
        %v303 = vld [vmem:[%s251 + $0x38] sm:$0xff]
        %v304 = vld [vmem:[%s251 + $0x40] sm:$0xff]
        %v305 = vld [vmem:[%s251 + $0x48] sm:$0xff]
        %v306 = vld [vmem:[%s251 + $0x50] sm:$0xff]
        %v307 = vld [vmem:[%s251 + $0x58] sm:$0xff]
        %v308 = vld [vmem:[%s251 + $0x60] sm:$0xff]
        %v309 = vld [vmem:[%s251 + $0x68] sm:$0xff]
        %v310 = vld [vmem:[%s251 + $0x70] sm:$0xff]
        %v311 = vld [vmem:[%s251 + $0x78] sm:$0xff]
        %v312 = vld [vmem:[%s251 + $0x80] sm:$0xff]
        %v313 = vld [vmem:[%s251 + $0x88] sm:$0xff]
        %v314 = vld [vmem:[%s251 + $0x90] sm:$0xff]
        %v315 = vld [vmem:[%s251 + $0x98] sm:$0xff]
        %v316 = vld [vmem:[%s251 + $0xa0] sm:$0xff]
        %v317 = vld [vmem:[%s251 + $0xa8] sm:$0xff]
        %v318 = vld [vmem:[%s251 + $0xb0] sm:$0xff]
        %v319 = vld [vmem:[%s251 + $0xb8] sm:$0xff]
        %v320 = vld [vmem:[%s251 + $0xc0] sm:$0xff]
        %v321 = vld [vmem:[%s251 + $0xc8] sm:$0xff]
        %v322 = vld [vmem:[%s251 + $0xd0] sm:$0xff]
        %v323 = vld [vmem:[%s251 + $0xd8] sm:$0xff]
        %v324 = vld [vmem:[%s251 + $0xe0] sm:$0xff]
        %v325 = vld [vmem:[%s251 + $0xe8] sm:$0xff]
        %v326 = vld [vmem:[%s251 + $0xf0] sm:$0xff]
        %v327 = vld [vmem:[%s251 + $0xf8] sm:$0xff]
        %v328 = vld [vmem:[%s251 + $0x100] sm:$0xff]
        %v329 = vld [vmem:[%s251 + $0x108] sm:$0xff]
        %v330 = vld [vmem:[%s251 + $0x110] sm:$0xff]
        %v331 = vld [vmem:[%s251 + $0x118] sm:$0xff]
        %v332 = vld [vmem:[%s251 + $0x120] sm:$0xff]
        %v333 = vld [vmem:[%s251 + $0x128] sm:$0xff]
        %v334 = vld [vmem:[#allocation5] sm:$0xff]
        %v335 = vld [vmem:[#allocation5 + $0x8] sm:$0xff]
        %v336 = vld [vmem:[#allocation5 + $0x10] sm:$0xff]
        %v337 = vld [vmem:[#allocation5 + $0x18] sm:$0xff]
        %v338 = vld [vmem:[#allocation5 + $0x20] sm:$0xff]
        %v339 = vld [vmem:[#allocation5 + $0x28] sm:$0xff]
        %v340 = vld [vmem:[#allocation5 + $0x30] sm:$0xff]
        %v341 = vld [vmem:[#allocation5 + $0x38] sm:$0xff]
        %v342 = vld [vmem:[#allocation5 + $0x40] sm:$0xff]
        %v343 = vld [vmem:[#allocation5 + $0x48] sm:$0xff]
        %v344 = vld [vmem:[#allocation5 + $0x50] sm:$0xff]
        %v345 = vld [vmem:[#allocation5 + $0x58] sm:$0xff]
        %v346 = vld [vmem:[#allocation5 + $0x60] sm:$0xff]
        %v347 = vld [vmem:[#allocation5 + $0x68] sm:$0xff]
        %v348 = vld [vmem:[#allocation5 + $0x70] sm:$0xff]
        %v349 = vld [vmem:[#allocation5 + $0x78] sm:$0xff]
        %v350 = vld [vmem:[#allocation5 + $0x80] sm:$0xff]
        %v351 = vld [vmem:[#allocation5 + $0x88] sm:$0xff]
        %v352 = vld [vmem:[#allocation5 + $0x90] sm:$0xff]
        %v353 = vld [vmem:[#allocation5 + $0x98] sm:$0xff]
        %v354 = vld [vmem:[#allocation5 + $0xa0] sm:$0xff]
        %v355 = vld [vmem:[#allocation5 + $0xa8] sm:$0xff]
        %v356 = vld [vmem:[#allocation5 + $0xb0] sm:$0xff]
        %v357 = vld [vmem:[#allocation5 + $0xb8] sm:$0xff]
        %v358 = vld [vmem:[#allocation5 + $0xc0] sm:$0xff]
        %v359 = vld [vmem:[#allocation5 + $0xc8] sm:$0xff]
        %v360 = vld [vmem:[#allocation5 + $0xd0] sm:$0xff]
        %v361 = vld [vmem:[#allocation5 + $0xd8] sm:$0xff]
        %v362 = vld [vmem:[#allocation5 + $0xe0] sm:$0xff]
        %v363 = vld [vmem:[#allocation5 + $0xe8] sm:$0xff]
        %v364 = vld [vmem:[#allocation5 + $0xf0] sm:$0xff]
        %v365 = vld [vmem:[#allocation5 + $0xf8] sm:$0xff]
        %v366 = vld [vmem:[#allocation5 + $0x100] sm:$0xff]
        %v367 = vld [vmem:[#allocation5 + $0x108] sm:$0xff]
        %v368 = vld [vmem:[#allocation5 + $0x110] sm:$0xff]
        %v369 = vld [vmem:[#allocation5 + $0x118] sm:$0xff]
        %v370 = vld [vmem:[#allocation5 + $0x120] sm:$0xff]
        %v371 = vld [vmem:[#allocation5 + $0x128] sm:$0xff]
        %v372 = vld [vmem:[#allocation5 + $0x130] sm:$0xff]
        %v373 = vld [vmem:[#allocation5 + $0x138] sm:$0xff]
        %v374 = vld [vmem:[#allocation5 + $0x140] sm:$0xff]
        %v375 = vld [vmem:[#allocation5 + $0x148] sm:$0xff]
        %v376 = vld [vmem:[#allocation5 + $0x150] sm:$0xff]
        %v377 = vld [vmem:[#allocation5 + $0x158] sm:$0xff]
        %v378 = vld [vmem:[#allocation5 + $0x160] sm:$0xff]
        %v379 = vld [vmem:[#allocation5 + $0x168] sm:$0xff]
        %v380 = vld [vmem:[#allocation5 + $0x170] sm:$0xff]
        %v381 = vld [vmem:[#allocation5 + $0x178] sm:$0xff]
        %v382 = vld [vmem:[#allocation5 + $0x180] sm:$0xff]
        %v383 = vld [vmem:[#allocation5 + $0x188] sm:$0xff]
        %v384 = vld [vmem:[#allocation5 + $0x190] sm:$0xff]
        %v385 = vld [vmem:[#allocation5 + $0x198] sm:$0xff]
        %v386 = vld [vmem:[#allocation5 + $0x1a0] sm:$0xff]
        %v387 = vld [vmem:[#allocation5 + $0x1a8] sm:$0xff]
        %v388 = vld [vmem:[#allocation5 + $0x1b0] sm:$0xff]
        %v389 = vld [vmem:[#allocation5 + $0x1b8] sm:$0xff]
        %v390 = vld [vmem:[#allocation5 + $0x1c0] sm:$0xff]
        %v391 = vld [vmem:[#allocation5 + $0x1c8] sm:$0xff]
        %v392 = vld [vmem:[#allocation5 + $0x1d0] sm:$0xff]
        %v393 = vld [vmem:[#allocation5 + $0x1d8] sm:$0xff]
        %v394 = vld [vmem:[#allocation5 + $0x1e0] sm:$0xff]
        %v395 = vld [vmem:[#allocation5 + $0x1e8] sm:$0xff]
        %v396 = vld [vmem:[#allocation5 + $0x1f0] sm:$0xff]
        %v397 = vld [vmem:[#allocation5 + $0x1f8] sm:$0xff]
        %v398 = vld [vmem:[#allocation7] sm:$0x3]
        %v400 = vperm.slane %v398, 0
        %v401 = vperm.slane %v398, 1
        %v442 = vunpack.c.l.b16 %v296
        %v443 = vunpack.c.h.b16 %v296
        %v444 = vunpack.c.l.b16 %v297
        %v445 = vunpack.c.h.b16 %v297
        %v446 = vunpack.c.l.b16 %v298
        %v447 = vunpack.c.h.b16 %v298
        %v448 = vunpack.c.l.b16 %v299
        %v449 = vunpack.c.h.b16 %v299
        %v450 = vunpack.c.l.b16 %v300
        %v451 = vunpack.c.h.b16 %v300
        %v452 = vunpack.c.l.b16 %v301
        %v453 = vunpack.c.h.b16 %v301
        %v454 = vunpack.c.l.b16 %v302
        %v455 = vunpack.c.h.b16 %v302
        %v456 = vunpack.c.l.b16 %v303
        %v457 = vunpack.c.h.b16 %v303
        %v458 = vunpack.c.l.b16 %v304
        %v459 = vunpack.c.h.b16 %v304
        %v460 = vunpack.c.l.b16 %v305
        %v461 = vunpack.c.h.b16 %v305
        %v462 = vunpack.c.l.b16 %v306
        %v463 = vunpack.c.h.b16 %v306
        %v464 = vunpack.c.l.b16 %v307
        %v465 = vunpack.c.h.b16 %v307
        %v466 = vunpack.c.l.b16 %v308
        %v467 = vunpack.c.h.b16 %v308
        %v468 = vunpack.c.l.b16 %v309
        %v469 = vunpack.c.h.b16 %v309
        %v470 = vunpack.c.l.b16 %v310
        %v471 = vunpack.c.h.b16 %v310
        %v472 = vunpack.c.l.b16 %v311
        %v473 = vunpack.c.h.b16 %v311
        %v474 = vunpack.c.l.b16 %v312
        %v475 = vunpack.c.h.b16 %v312
        %v476 = vunpack.c.l.b16 %v313
        %v477 = vunpack.c.h.b16 %v313
        %v478 = vunpack.c.l.b16 %v314
        %v479 = vunpack.c.h.b16 %v314
        %v480 = vunpack.c.l.b16 %v315
        %v481 = vunpack.c.h.b16 %v315
        %v482 = vunpack.c.l.b16 %v316
        %v483 = vunpack.c.h.b16 %v316
        %v484 = vunpack.c.l.b16 %v317
        %v485 = vunpack.c.h.b16 %v317
        %v486 = vunpack.c.l.b16 %v318
        %v487 = vunpack.c.h.b16 %v318
        %v488 = vunpack.c.l.b16 %v319
        %v489 = vunpack.c.h.b16 %v319
        %v490 = vunpack.c.l.b16 %v320
        %v491 = vunpack.c.h.b16 %v320
        %v492 = vunpack.c.l.b16 %v321
        %v493 = vunpack.c.h.b16 %v321
        %v494 = vunpack.c.l.b16 %v322
        %v495 = vunpack.c.h.b16 %v322
        %v496 = vunpack.c.l.b16 %v323
        %v497 = vunpack.c.h.b16 %v323
        %v498 = vunpack.c.l.b16 %v324
        %v499 = vunpack.c.h.b16 %v324
        %v500 = vunpack.c.l.b16 %v325
        %v501 = vunpack.c.h.b16 %v325
        %v502 = vunpack.c.l.b16 %v326
        %v503 = vunpack.c.h.b16 %v326
        %v504 = vunpack.c.l.b16 %v327
        %v505 = vunpack.c.h.b16 %v327
        %v506 = vunpack.c.l.b16 %v328
        %v507 = vunpack.c.h.b16 %v328
        %v508 = vunpack.c.l.b16 %v329
        %v509 = vunpack.c.h.b16 %v329
        %v510 = vunpack.c.l.b16 %v330
        %v511 = vunpack.c.h.b16 %v330
        %v512 = vunpack.c.l.b16 %v331
        %v513 = vunpack.c.h.b16 %v331
        %v514 = vunpack.c.l.b16 %v332
        %v515 = vunpack.c.h.b16 %v332
        %v516 = vunpack.c.l.b16 %v333
        %v517 = vunpack.c.h.b16 %v333
        %v518 = vpack.c.b16 %v446, %v442
        %v519 = vpack.c.b16 %v447, %v443
        %v520 = vpack.c.b16 %v448, %v444
        %v521 = vpack.c.b16 %v449, %v445
        %v522 = vpack.c.b16 %v454, %v450
        %v523 = vpack.c.b16 %v455, %v451
        %v524 = vpack.c.b16 %v456, %v452
        %v525 = vpack.c.b16 %v457, %v453
        %v526 = vpack.c.b16 %v462, %v458
        %v527 = vpack.c.b16 %v463, %v459
        %v528 = vpack.c.b16 %v464, %v460
        %v529 = vpack.c.b16 %v465, %v461
        %v530 = vpack.c.b16 %v470, %v466
        %v531 = vpack.c.b16 %v471, %v467
        %v532 = vpack.c.b16 %v472, %v468
        %v533 = vpack.c.b16 %v473, %v469
        %v534 = vpack.c.b16 %v478, %v474
        %v535 = vpack.c.b16 %v479, %v475
        %v536 = vpack.c.b16 %v480, %v476
        %v537 = vpack.c.b16 %v481, %v477
        %v538 = vpack.c.b16 %v486, %v482
        %v539 = vpack.c.b16 %v487, %v483
        %v540 = vpack.c.b16 %v488, %v484
        %v541 = vpack.c.b16 %v489, %v485
        %v542 = vpack.c.b16 %v494, %v490
        %v543 = vpack.c.b16 %v495, %v491
        %v544 = vpack.c.b16 %v496, %v492
        %v545 = vpack.c.b16 %v497, %v493
        %v546 = vpack.c.b16 %v502, %v498
        %v547 = vpack.c.b16 %v503, %v499
        %v548 = vpack.c.b16 %v504, %v500
        %v549 = vpack.c.b16 %v505, %v501
        %v550 = vpack.c.b16 %v510, %v506
        %v551 = vpack.c.b16 %v511, %v507
        %v552 = vpack.c.b16 %v512, %v508
        %v553 = vpack.c.b16 %v513, %v509
        %v554 = vpack.c.b16 %v514, %v514
        %v555 = vpack.c.b16 %v515, %v515
        %v556 = vpack.c.b16 %v516, %v516
        %v557 = vpack.c.b16 %v517, %v517
        %v662 = vunpack.c.l.b16 %v334
        %v663 = vunpack.c.h.b16 %v334
        %v664 = vunpack.c.l.b16 %v335
        %v665 = vunpack.c.h.b16 %v335
        %v666 = vunpack.c.l.b16 %v336
        %v667 = vunpack.c.h.b16 %v336
        %v668 = vunpack.c.l.b16 %v337
        %v669 = vunpack.c.h.b16 %v337
        %v670 = vunpack.c.l.b16 %v338
        %v671 = vunpack.c.h.b16 %v338
        %v672 = vunpack.c.l.b16 %v339
        %v673 = vunpack.c.h.b16 %v339
        %v674 = vunpack.c.l.b16 %v340
        %v675 = vunpack.c.h.b16 %v340
        %v676 = vunpack.c.l.b16 %v341
        %v677 = vunpack.c.h.b16 %v341
        %v678 = vunpack.c.l.b16 %v342
        %v679 = vunpack.c.h.b16 %v342
        %v680 = vunpack.c.l.b16 %v343
        %v681 = vunpack.c.h.b16 %v343
        %v682 = vunpack.c.l.b16 %v344
        %v683 = vunpack.c.h.b16 %v344
        %v684 = vunpack.c.l.b16 %v345
        %v685 = vunpack.c.h.b16 %v345
        %v686 = vunpack.c.l.b16 %v346
        %v687 = vunpack.c.h.b16 %v346
        %v688 = vunpack.c.l.b16 %v347
        %v689 = vunpack.c.h.b16 %v347
        %v690 = vunpack.c.l.b16 %v348
        %v691 = vunpack.c.h.b16 %v348
        %v692 = vunpack.c.l.b16 %v349
        %v693 = vunpack.c.h.b16 %v349
        %v694 = vunpack.c.l.b16 %v350
        %v695 = vunpack.c.h.b16 %v350
        %v696 = vunpack.c.l.b16 %v351
        %v697 = vunpack.c.h.b16 %v351
        %v698 = vunpack.c.l.b16 %v352
        %v699 = vunpack.c.h.b16 %v352
        %v700 = vunpack.c.l.b16 %v353
        %v701 = vunpack.c.h.b16 %v353
        %v702 = vunpack.c.l.b16 %v354
        %v703 = vunpack.c.h.b16 %v354
        %v704 = vunpack.c.l.b16 %v355
        %v705 = vunpack.c.h.b16 %v355
        %v706 = vunpack.c.l.b16 %v356
        %v707 = vunpack.c.h.b16 %v356
        %v708 = vunpack.c.l.b16 %v357
        %v709 = vunpack.c.h.b16 %v357
        %v710 = vunpack.c.l.b16 %v358
        %v711 = vunpack.c.h.b16 %v358
        %v712 = vunpack.c.l.b16 %v359
        %v713 = vunpack.c.h.b16 %v359
        %v714 = vunpack.c.l.b16 %v360
        %v715 = vunpack.c.h.b16 %v360
        %v716 = vunpack.c.l.b16 %v361
        %v717 = vunpack.c.h.b16 %v361
        %v718 = vunpack.c.l.b16 %v362
        %v719 = vunpack.c.h.b16 %v362
        %v720 = vunpack.c.l.b16 %v363
        %v721 = vunpack.c.h.b16 %v363
        %v722 = vunpack.c.l.b16 %v364
        %v723 = vunpack.c.h.b16 %v364
        %v724 = vunpack.c.l.b16 %v365
        %v725 = vunpack.c.h.b16 %v365
        %v726 = vunpack.c.l.b16 %v366
        %v727 = vunpack.c.h.b16 %v366
        %v728 = vunpack.c.l.b16 %v367
        %v729 = vunpack.c.h.b16 %v367
        %v730 = vunpack.c.l.b16 %v368
        %v731 = vunpack.c.h.b16 %v368
        %v732 = vunpack.c.l.b16 %v369
        %v733 = vunpack.c.h.b16 %v369
        %v734 = vunpack.c.l.b16 %v370
        %v735 = vunpack.c.h.b16 %v370
        %v736 = vunpack.c.l.b16 %v371
        %v737 = vunpack.c.h.b16 %v371
        %v738 = vunpack.c.l.b16 %v372
        %v739 = vunpack.c.h.b16 %v372
        %v740 = vunpack.c.l.b16 %v373
        %v741 = vunpack.c.h.b16 %v373
        %v742 = vunpack.c.l.b16 %v374
        %v743 = vunpack.c.h.b16 %v374
        %v744 = vunpack.c.l.b16 %v375
        %v745 = vunpack.c.h.b16 %v375
        %v746 = vunpack.c.l.b16 %v376
        %v747 = vunpack.c.h.b16 %v376
        %v748 = vunpack.c.l.b16 %v377
        %v749 = vunpack.c.h.b16 %v377
        %v750 = vunpack.c.l.b16 %v378
        %v751 = vunpack.c.h.b16 %v378
        %v752 = vunpack.c.l.b16 %v379
        %v753 = vunpack.c.h.b16 %v379
        %v754 = vunpack.c.l.b16 %v380
        %v755 = vunpack.c.h.b16 %v380
        %v756 = vunpack.c.l.b16 %v381
        %v757 = vunpack.c.h.b16 %v381
        %v758 = vunpack.c.l.b16 %v382
        %v759 = vunpack.c.h.b16 %v382
        %v760 = vunpack.c.l.b16 %v383
        %v761 = vunpack.c.h.b16 %v383
        %v762 = vunpack.c.l.b16 %v384
        %v763 = vunpack.c.h.b16 %v384
        %v764 = vunpack.c.l.b16 %v385
        %v765 = vunpack.c.h.b16 %v385
        %v766 = vunpack.c.l.b16 %v386
        %v767 = vunpack.c.h.b16 %v386
        %v768 = vunpack.c.l.b16 %v387
        %v769 = vunpack.c.h.b16 %v387
        %v770 = vunpack.c.l.b16 %v388
        %v771 = vunpack.c.h.b16 %v388
        %v772 = vunpack.c.l.b16 %v389
        %v773 = vunpack.c.h.b16 %v389
        %v774 = vunpack.c.l.b16 %v390
        %v775 = vunpack.c.h.b16 %v390
        %v776 = vunpack.c.l.b16 %v391
        %v777 = vunpack.c.h.b16 %v391
        %v778 = vunpack.c.l.b16 %v392
        %v779 = vunpack.c.h.b16 %v392
        %v780 = vunpack.c.l.b16 %v393
        %v781 = vunpack.c.h.b16 %v393
        %v782 = vunpack.c.l.b16 %v394
        %v783 = vunpack.c.h.b16 %v394
        %v784 = vunpack.c.l.b16 %v395
        %v785 = vunpack.c.h.b16 %v395
        %v786 = vunpack.c.l.b16 %v396
        %v787 = vunpack.c.h.b16 %v396
        %v788 = vunpack.c.l.b16 %v397
        %v789 = vunpack.c.h.b16 %v397
        %v790 = vpack.c.b16 %v664, %v662
        %v791 = vpack.c.b16 %v665, %v663
        %v792 = vpack.c.b16 %v668, %v666
        %v793 = vpack.c.b16 %v669, %v667
        %v794 = vpack.c.b16 %v672, %v670
        %v795 = vpack.c.b16 %v673, %v671
        %v796 = vpack.c.b16 %v676, %v674
        %v797 = vpack.c.b16 %v677, %v675
        %v798 = vpack.c.b16 %v680, %v678
        %v799 = vpack.c.b16 %v681, %v679
        %v800 = vpack.c.b16 %v684, %v682
        %v801 = vpack.c.b16 %v685, %v683
        %v802 = vpack.c.b16 %v688, %v686
        %v803 = vpack.c.b16 %v689, %v687
        %v804 = vpack.c.b16 %v692, %v690
        %v805 = vpack.c.b16 %v693, %v691
        %v806 = vpack.c.b16 %v696, %v694
        %v807 = vpack.c.b16 %v697, %v695
        %v808 = vpack.c.b16 %v700, %v698
        %v809 = vpack.c.b16 %v701, %v699
        %v810 = vpack.c.b16 %v704, %v702
        %v811 = vpack.c.b16 %v705, %v703
        %v812 = vpack.c.b16 %v708, %v706
        %v813 = vpack.c.b16 %v709, %v707
        %v814 = vpack.c.b16 %v712, %v710
        %v815 = vpack.c.b16 %v713, %v711
        %v816 = vpack.c.b16 %v716, %v714
        %v817 = vpack.c.b16 %v717, %v715
        %v818 = vpack.c.b16 %v720, %v718
        %v819 = vpack.c.b16 %v721, %v719
        %v820 = vpack.c.b16 %v724, %v722
        %v821 = vpack.c.b16 %v725, %v723
        %v822 = vpack.c.b16 %v728, %v726
        %v823 = vpack.c.b16 %v729, %v727
        %v824 = vpack.c.b16 %v732, %v730
        %v825 = vpack.c.b16 %v733, %v731
        %v826 = vpack.c.b16 %v736, %v734
        %v827 = vpack.c.b16 %v737, %v735
        %v828 = vpack.c.b16 %v740, %v738
        %v829 = vpack.c.b16 %v741, %v739
        %v830 = vpack.c.b16 %v744, %v742
        %v831 = vpack.c.b16 %v745, %v743
        %v832 = vpack.c.b16 %v748, %v746
        %v833 = vpack.c.b16 %v749, %v747
        %v834 = vpack.c.b16 %v752, %v750
        %v835 = vpack.c.b16 %v753, %v751
        %v836 = vpack.c.b16 %v756, %v754
        %v837 = vpack.c.b16 %v757, %v755
        %v838 = vpack.c.b16 %v760, %v758
        %v839 = vpack.c.b16 %v761, %v759
        %v840 = vpack.c.b16 %v764, %v762
        %v841 = vpack.c.b16 %v765, %v763
        %v842 = vpack.c.b16 %v768, %v766
        %v843 = vpack.c.b16 %v769, %v767
        %v844 = vpack.c.b16 %v772, %v770
        %v845 = vpack.c.b16 %v773, %v771
        %v846 = vpack.c.b16 %v776, %v774
        %v847 = vpack.c.b16 %v777, %v775
        %v848 = vpack.c.b16 %v780, %v778
        %v849 = vpack.c.b16 %v781, %v779
        %v850 = vpack.c.b16 %v784, %v782
        %v851 = vpack.c.b16 %v785, %v783
        %v852 = vpack.c.b16 %v788, %v786
        %v853 = vpack.c.b16 %v789, %v787
        %918 = vmatpush.bf16.msra.mxu0 %v804
        %919 = vmatpush.bf16.msra.mxu0 %v802
        %920 = vmatpush.bf16.msra.mxu0 %v800
        %921 = vmatpush.bf16.msra.mxu0 %v798
        %922 = vmatpush.bf16.msra.mxu0 %v796
        %923 = vmatpush.bf16.msra.mxu0 %v794
        %924 = vmatpush.bf16.msra.mxu0 %v792
        %925 = vmatpush.bf16.msra.mxu0 %v790
        %926 = vmatmul.bf16.gmra.mxu0 %v518
        %v927 = vpop.f32.mrf.mxu0
        %v928 = vadd.f32 %v400, %v927
        %v929 = vpop.f32.mrf.mxu0
        %v930 = vadd.f32 %v400, %v929
        %931 = vmatmul.bf16.gmra.mxu0 %v522
        %v932 = vpop.f32.mrf.mxu0
        %v933 = vadd.f32 %v400, %v932
        %v934 = vpop.f32.mrf.mxu0
        %v935 = vadd.f32 %v400, %v934
        %936 = vmatmul.bf16.gmra.mxu0 %v526
        %v937 = vpop.f32.mrf.mxu0
        %v938 = vadd.f32 %v400, %v937
        %v939 = vpop.f32.mrf.mxu0
        %v940 = vadd.f32 %v400, %v939
        %941 = vmatmul.bf16.gmra.mxu0 %v530
        %v942 = vpop.f32.mrf.mxu0
        %v943 = vadd.f32 %v400, %v942
        %v944 = vpop.f32.mrf.mxu0
        %v945 = vadd.f32 %v400, %v944
        %946 = vmatmul.bf16.gmra.mxu0 %v534
        %v947 = vpop.f32.mrf.mxu0
        %v948 = vadd.f32 %v400, %v947
        %v949 = vpop.f32.mrf.mxu0
        %v950 = vadd.f32 %v400, %v949
        %951 = vmatmul.bf16.gmra.mxu0 %v538
        %v952 = vpop.f32.mrf.mxu0
        %v953 = vadd.f32 %v400, %v952
        %v954 = vpop.f32.mrf.mxu0
        %v955 = vadd.f32 %v400, %v954
        %956 = vmatmul.bf16.gmra.mxu0 %v542
        %v957 = vpop.f32.mrf.mxu0
        %v958 = vadd.f32 %v400, %v957
        %v959 = vpop.f32.mrf.mxu0
        %v960 = vadd.f32 %v400, %v959
        %961 = vmatmul.bf16.gmra.mxu0 %v546
        %v962 = vpop.f32.mrf.mxu0
        %v963 = vadd.f32 %v400, %v962
        %v964 = vpop.f32.mrf.mxu0
        %v965 = vadd.f32 %v400, %v964
        %966 = vmatmul.bf16.gmra.mxu0 %v550
        %v967 = vpop.f32.mrf.mxu0
        %v968 = vadd.f32 %v400, %v967
        %v969 = vpop.f32.mrf.mxu0
        %v970 = vadd.f32 %v400, %v969
        %971 = vmatmul.bf16.gmra.mxu0 %v554
        %v972 = vpop.f32.mrf.mxu0
        %v973 = vadd.f32 %v400, %v972
        %v974 = vpop.f32.mrf.mxu0
        %975 = vdwg.mxu0
        %976 = vmatpush.bf16.msra.mxu0 %v820
        %977 = vmatpush.bf16.msra.mxu0 %v818
        %978 = vmatpush.bf16.msra.mxu0 %v816
        %979 = vmatpush.bf16.msra.mxu0 %v814
        %980 = vmatpush.bf16.msra.mxu0 %v812
        %981 = vmatpush.bf16.msra.mxu0 %v810
        %982 = vmatpush.bf16.msra.mxu0 %v808
        %983 = vmatpush.bf16.msra.mxu0 %v806
        %984 = vmatmul.bf16.gmra.mxu0 %v519
        %v985 = vpop.f32.mrf.mxu0
        %v986 = vadd.f32 %v928, %v985
        %v987 = vpop.f32.mrf.mxu0
        %v988 = vadd.f32 %v930, %v987
        %989 = vmatmul.bf16.gmra.mxu0 %v523
        %v990 = vpop.f32.mrf.mxu0
        %v991 = vadd.f32 %v933, %v990
        %v992 = vpop.f32.mrf.mxu0
        %v993 = vadd.f32 %v935, %v992
        %994 = vmatmul.bf16.gmra.mxu0 %v527
        %v995 = vpop.f32.mrf.mxu0
        %v996 = vadd.f32 %v938, %v995
        %v997 = vpop.f32.mrf.mxu0
        %v998 = vadd.f32 %v940, %v997
        %999 = vmatmul.bf16.gmra.mxu0 %v531
        %v1000 = vpop.f32.mrf.mxu0
        %v1001 = vadd.f32 %v943, %v1000
        %v1002 = vpop.f32.mrf.mxu0
        %v1003 = vadd.f32 %v945, %v1002
        %1004 = vmatmul.bf16.gmra.mxu0 %v535
        %v1005 = vpop.f32.mrf.mxu0
        %v1006 = vadd.f32 %v948, %v1005
        %v1007 = vpop.f32.mrf.mxu0
        %v1008 = vadd.f32 %v950, %v1007
        %1009 = vmatmul.bf16.gmra.mxu0 %v539
        %v1010 = vpop.f32.mrf.mxu0
        %v1011 = vadd.f32 %v953, %v1010
        %v1012 = vpop.f32.mrf.mxu0
        %v1013 = vadd.f32 %v955, %v1012
        %1014 = vmatmul.bf16.gmra.mxu0 %v543
        %v1015 = vpop.f32.mrf.mxu0
        %v1016 = vadd.f32 %v958, %v1015
        %v1017 = vpop.f32.mrf.mxu0
        %v1018 = vadd.f32 %v960, %v1017
        %1019 = vmatmul.bf16.gmra.mxu0 %v547
        %v1020 = vpop.f32.mrf.mxu0
        %v1021 = vadd.f32 %v963, %v1020
        %v1022 = vpop.f32.mrf.mxu0
        %v1023 = vadd.f32 %v965, %v1022
        %1024 = vmatmul.bf16.gmra.mxu0 %v551
        %v1025 = vpop.f32.mrf.mxu0
        %v1026 = vadd.f32 %v968, %v1025
        %v1027 = vpop.f32.mrf.mxu0
        %v1028 = vadd.f32 %v970, %v1027
        %1029 = vmatmul.bf16.gmra.mxu0 %v555
        %v1030 = vpop.f32.mrf.mxu0
        %v1031 = vadd.f32 %v973, %v1030
        %v1032 = vpop.f32.mrf.mxu0
        %1033 = vdwg.mxu0
        %1034 = vmatpush.bf16.msra.mxu0 %v836
        %1035 = vmatpush.bf16.msra.mxu0 %v834
        %1036 = vmatpush.bf16.msra.mxu0 %v832
        %1037 = vmatpush.bf16.msra.mxu0 %v830
        %1038 = vmatpush.bf16.msra.mxu0 %v828
        %1039 = vmatpush.bf16.msra.mxu0 %v826
        %1040 = vmatpush.bf16.msra.mxu0 %v824
        %1041 = vmatpush.bf16.msra.mxu0 %v822
        %1042 = vmatmul.bf16.gmra.mxu0 %v520
        %v1043 = vpop.f32.mrf.mxu0
        %v1044 = vadd.f32 %v986, %v1043
        %v1045 = vpop.f32.mrf.mxu0
        %v1046 = vadd.f32 %v988, %v1045
        %1047 = vmatmul.bf16.gmra.mxu0 %v524
        %v1048 = vpop.f32.mrf.mxu0
        %v1049 = vadd.f32 %v991, %v1048
        %v1050 = vpop.f32.mrf.mxu0
        %v1051 = vadd.f32 %v993, %v1050
        %1052 = vmatmul.bf16.gmra.mxu0 %v528
        %v1053 = vpop.f32.mrf.mxu0
        %v1054 = vadd.f32 %v996, %v1053
        %v1055 = vpop.f32.mrf.mxu0
        %v1056 = vadd.f32 %v998, %v1055
        %1057 = vmatmul.bf16.gmra.mxu0 %v532
        %v1058 = vpop.f32.mrf.mxu0
        %v1059 = vadd.f32 %v1001, %v1058
        %v1060 = vpop.f32.mrf.mxu0
        %v1061 = vadd.f32 %v1003, %v1060
        %1062 = vmatmul.bf16.gmra.mxu0 %v536
        %v1063 = vpop.f32.mrf.mxu0
        %v1064 = vadd.f32 %v1006, %v1063
        %v1065 = vpop.f32.mrf.mxu0
        %v1066 = vadd.f32 %v1008, %v1065
        %1067 = vmatmul.bf16.gmra.mxu0 %v540
        %v1068 = vpop.f32.mrf.mxu0
        %v1069 = vadd.f32 %v1011, %v1068
        %v1070 = vpop.f32.mrf.mxu0
        %v1071 = vadd.f32 %v1013, %v1070
        %1072 = vmatmul.bf16.gmra.mxu0 %v544
        %v1073 = vpop.f32.mrf.mxu0
        %v1074 = vadd.f32 %v1016, %v1073
        %v1075 = vpop.f32.mrf.mxu0
        %v1076 = vadd.f32 %v1018, %v1075
        %1077 = vmatmul.bf16.gmra.mxu0 %v548
        %v1078 = vpop.f32.mrf.mxu0
        %v1079 = vadd.f32 %v1021, %v1078
        %v1080 = vpop.f32.mrf.mxu0
        %v1081 = vadd.f32 %v1023, %v1080
        %1082 = vmatmul.bf16.gmra.mxu0 %v552
        %v1083 = vpop.f32.mrf.mxu0
        %v1084 = vadd.f32 %v1026, %v1083
        %v1085 = vpop.f32.mrf.mxu0
        %v1086 = vadd.f32 %v1028, %v1085
        %1087 = vmatmul.bf16.gmra.mxu0 %v556
        %v1088 = vpop.f32.mrf.mxu0
        %v1089 = vadd.f32 %v1031, %v1088
        %v1090 = vpop.f32.mrf.mxu0
        %1091 = vdwg.mxu0
        %1092 = vmatpush.bf16.msra.mxu0 %v852
        %1093 = vmatpush.bf16.msra.mxu0 %v850
        %1094 = vmatpush.bf16.msra.mxu0 %v848
        %1095 = vmatpush.bf16.msra.mxu0 %v846
        %1096 = vmatpush.bf16.msra.mxu0 %v844
        %1097 = vmatpush.bf16.msra.mxu0 %v842
        %1098 = vmatpush.bf16.msra.mxu0 %v840
        %1099 = vmatpush.bf16.msra.mxu0 %v838
        %1100 = vmatmul.bf16.gmra.mxu0 %v521
        %v1101 = vpop.f32.mrf.mxu0
        %v1102 = vadd.f32 %v1044, %v1101
        %v1103 = vpop.f32.mrf.mxu0
        %v1104 = vadd.f32 %v1046, %v1103
        %1105 = vmatmul.bf16.gmra.mxu0 %v525
        %v1106 = vpop.f32.mrf.mxu0
        %v1107 = vadd.f32 %v1049, %v1106
        %v1108 = vpop.f32.mrf.mxu0
        %v1109 = vadd.f32 %v1051, %v1108
        %1110 = vmatmul.bf16.gmra.mxu0 %v529
        %v1111 = vpop.f32.mrf.mxu0
        %v1112 = vadd.f32 %v1054, %v1111
        %v1113 = vpop.f32.mrf.mxu0
        %v1114 = vadd.f32 %v1056, %v1113
        %1115 = vmatmul.bf16.gmra.mxu0 %v533
        %v1116 = vpop.f32.mrf.mxu0
        %v1117 = vadd.f32 %v1059, %v1116
        %v1118 = vpop.f32.mrf.mxu0
        %v1119 = vadd.f32 %v1061, %v1118
        %1120 = vmatmul.bf16.gmra.mxu0 %v537
        %v1121 = vpop.f32.mrf.mxu0
        %v1122 = vadd.f32 %v1064, %v1121
        %v1123 = vpop.f32.mrf.mxu0
        %v1124 = vadd.f32 %v1066, %v1123
        %1125 = vmatmul.bf16.gmra.mxu0 %v541
        %v1126 = vpop.f32.mrf.mxu0
        %v1127 = vadd.f32 %v1069, %v1126
        %v1128 = vpop.f32.mrf.mxu0
        %v1129 = vadd.f32 %v1071, %v1128
        %1130 = vmatmul.bf16.gmra.mxu0 %v545
        %v1131 = vpop.f32.mrf.mxu0
        %v1132 = vadd.f32 %v1074, %v1131
        %v1133 = vpop.f32.mrf.mxu0
        %v1134 = vadd.f32 %v1076, %v1133
        %1135 = vmatmul.bf16.gmra.mxu0 %v549
        %v1136 = vpop.f32.mrf.mxu0
        %v1137 = vadd.f32 %v1079, %v1136
        %v1138 = vpop.f32.mrf.mxu0
        %v1139 = vadd.f32 %v1081, %v1138
        %1140 = vmatmul.bf16.gmra.mxu0 %v553
        %v1141 = vpop.f32.mrf.mxu0
        %v1142 = vadd.f32 %v1084, %v1141
        %v1143 = vpop.f32.mrf.mxu0
        %v1144 = vadd.f32 %v1086, %v1143
        %1145 = vmatmul.bf16.gmra.mxu0 %v557
        %v1146 = vpop.f32.mrf.mxu0
        %v1147 = vadd.f32 %v1089, %v1146
        %v1148 = vpop.f32.mrf.mxu0
        %1149 = vdwg.mxu0
        %1150 = vmatpush.bf16.msra.mxu0 %v805
        %1151 = vmatpush.bf16.msra.mxu0 %v803
        %1152 = vmatpush.bf16.msra.mxu0 %v801
        %1153 = vmatpush.bf16.msra.mxu0 %v799
        %1154 = vmatpush.bf16.msra.mxu0 %v797
        %1155 = vmatpush.bf16.msra.mxu0 %v795
        %1156 = vmatpush.bf16.msra.mxu0 %v793
        %1157 = vmatpush.bf16.msra.mxu0 %v791
        %1158 = vmatmul.bf16.gmra.mxu0 %v518
        %v1159 = vpop.f32.mrf.mxu0
        %v1160 = vadd.f32 %v401, %v1159
        %v1161 = vpop.f32.mrf.mxu0
        %v1162 = vadd.f32 %v401, %v1161
        %1163 = vmatmul.bf16.gmra.mxu0 %v522
        %v1164 = vpop.f32.mrf.mxu0
        %v1165 = vadd.f32 %v401, %v1164
        %v1166 = vpop.f32.mrf.mxu0
        %v1167 = vadd.f32 %v401, %v1166
        %1168 = vmatmul.bf16.gmra.mxu0 %v526
        %v1169 = vpop.f32.mrf.mxu0
        %v1170 = vadd.f32 %v401, %v1169
        %v1171 = vpop.f32.mrf.mxu0
        %v1172 = vadd.f32 %v401, %v1171
        %1173 = vmatmul.bf16.gmra.mxu0 %v530
        %v1174 = vpop.f32.mrf.mxu0
        %v1175 = vadd.f32 %v401, %v1174
        %v1176 = vpop.f32.mrf.mxu0
        %v1177 = vadd.f32 %v401, %v1176
        %1178 = vmatmul.bf16.gmra.mxu0 %v534
        %v1179 = vpop.f32.mrf.mxu0
        %v1180 = vadd.f32 %v401, %v1179
        %v1181 = vpop.f32.mrf.mxu0
        %v1182 = vadd.f32 %v401, %v1181
        %1183 = vmatmul.bf16.gmra.mxu0 %v538
        %v1184 = vpop.f32.mrf.mxu0
        %v1185 = vadd.f32 %v401, %v1184
        %v1186 = vpop.f32.mrf.mxu0
        %v1187 = vadd.f32 %v401, %v1186
        %1188 = vmatmul.bf16.gmra.mxu0 %v542
        %v1189 = vpop.f32.mrf.mxu0
        %v1190 = vadd.f32 %v401, %v1189
        %v1191 = vpop.f32.mrf.mxu0
        %v1192 = vadd.f32 %v401, %v1191
        %1193 = vmatmul.bf16.gmra.mxu0 %v546
        %v1194 = vpop.f32.mrf.mxu0
        %v1195 = vadd.f32 %v401, %v1194
        %v1196 = vpop.f32.mrf.mxu0
        %v1197 = vadd.f32 %v401, %v1196
        %1198 = vmatmul.bf16.gmra.mxu0 %v550
        %v1199 = vpop.f32.mrf.mxu0
        %v1200 = vadd.f32 %v401, %v1199
        %v1201 = vpop.f32.mrf.mxu0
        %v1202 = vadd.f32 %v401, %v1201
        %1203 = vmatmul.bf16.gmra.mxu0 %v554
        %v1204 = vpop.f32.mrf.mxu0
        %v1205 = vadd.f32 %v401, %v1204
        %v1206 = vpop.f32.mrf.mxu0
        %1207 = vdwg.mxu0
        %1208 = vmatpush.bf16.msra.mxu0 %v821
        %1209 = vmatpush.bf16.msra.mxu0 %v819
        %1210 = vmatpush.bf16.msra.mxu0 %v817
        %1211 = vmatpush.bf16.msra.mxu0 %v815
        %1212 = vmatpush.bf16.msra.mxu0 %v813
        %1213 = vmatpush.bf16.msra.mxu0 %v811
        %1214 = vmatpush.bf16.msra.mxu0 %v809
        %1215 = vmatpush.bf16.msra.mxu0 %v807
        %1216 = vmatmul.bf16.gmra.mxu0 %v519
        %v1217 = vpop.f32.mrf.mxu0
        %v1218 = vadd.f32 %v1160, %v1217
        %v1219 = vpop.f32.mrf.mxu0
        %v1220 = vadd.f32 %v1162, %v1219
        %1221 = vmatmul.bf16.gmra.mxu0 %v523
        %v1222 = vpop.f32.mrf.mxu0
        %v1223 = vadd.f32 %v1165, %v1222
        %v1224 = vpop.f32.mrf.mxu0
        %v1225 = vadd.f32 %v1167, %v1224
        %1226 = vmatmul.bf16.gmra.mxu0 %v527
        %v1227 = vpop.f32.mrf.mxu0
        %v1228 = vadd.f32 %v1170, %v1227
        %v1229 = vpop.f32.mrf.mxu0
        %v1230 = vadd.f32 %v1172, %v1229
        %1231 = vmatmul.bf16.gmra.mxu0 %v531
        %v1232 = vpop.f32.mrf.mxu0
        %v1233 = vadd.f32 %v1175, %v1232
        %v1234 = vpop.f32.mrf.mxu0
        %v1235 = vadd.f32 %v1177, %v1234
        %1236 = vmatmul.bf16.gmra.mxu0 %v535
        %v1237 = vpop.f32.mrf.mxu0
        %v1238 = vadd.f32 %v1180, %v1237
        %v1239 = vpop.f32.mrf.mxu0
        %v1240 = vadd.f32 %v1182, %v1239
        %1241 = vmatmul.bf16.gmra.mxu0 %v539
        %v1242 = vpop.f32.mrf.mxu0
        %v1243 = vadd.f32 %v1185, %v1242
        %v1244 = vpop.f32.mrf.mxu0
        %v1245 = vadd.f32 %v1187, %v1244
        %1246 = vmatmul.bf16.gmra.mxu0 %v543
        %v1247 = vpop.f32.mrf.mxu0
        %v1248 = vadd.f32 %v1190, %v1247
        %v1249 = vpop.f32.mrf.mxu0
        %v1250 = vadd.f32 %v1192, %v1249
        %1251 = vmatmul.bf16.gmra.mxu0 %v547
        %v1252 = vpop.f32.mrf.mxu0
        %v1253 = vadd.f32 %v1195, %v1252
        %v1254 = vpop.f32.mrf.mxu0
        %v1255 = vadd.f32 %v1197, %v1254
        %1256 = vmatmul.bf16.gmra.mxu0 %v551
        %v1257 = vpop.f32.mrf.mxu0
        %v1258 = vadd.f32 %v1200, %v1257
        %v1259 = vpop.f32.mrf.mxu0
        %v1260 = vadd.f32 %v1202, %v1259
        %1261 = vmatmul.bf16.gmra.mxu0 %v555
        %v1262 = vpop.f32.mrf.mxu0
        %v1263 = vadd.f32 %v1205, %v1262
        %v1264 = vpop.f32.mrf.mxu0
        %1265 = vdwg.mxu0
        %1266 = vmatpush.bf16.msra.mxu0 %v837
        %1267 = vmatpush.bf16.msra.mxu0 %v835
        %1268 = vmatpush.bf16.msra.mxu0 %v833
        %1269 = vmatpush.bf16.msra.mxu0 %v831
        %1270 = vmatpush.bf16.msra.mxu0 %v829
        %1271 = vmatpush.bf16.msra.mxu0 %v827
        %1272 = vmatpush.bf16.msra.mxu0 %v825
        %1273 = vmatpush.bf16.msra.mxu0 %v823
        %1274 = vmatmul.bf16.gmra.mxu0 %v520
        %v1275 = vpop.f32.mrf.mxu0
        %v1276 = vadd.f32 %v1218, %v1275
        %v1277 = vpop.f32.mrf.mxu0
        %v1278 = vadd.f32 %v1220, %v1277
        %1279 = vmatmul.bf16.gmra.mxu0 %v524
        %v1280 = vpop.f32.mrf.mxu0
        %v1281 = vadd.f32 %v1223, %v1280
        %v1282 = vpop.f32.mrf.mxu0
        %v1283 = vadd.f32 %v1225, %v1282
        %1284 = vmatmul.bf16.gmra.mxu0 %v528
        %v1285 = vpop.f32.mrf.mxu0
        %v1286 = vadd.f32 %v1228, %v1285
        %v1287 = vpop.f32.mrf.mxu0
        %v1288 = vadd.f32 %v1230, %v1287
        %1289 = vmatmul.bf16.gmra.mxu0 %v532
        %v1290 = vpop.f32.mrf.mxu0
        %v1291 = vadd.f32 %v1233, %v1290
        %v1292 = vpop.f32.mrf.mxu0
        %v1293 = vadd.f32 %v1235, %v1292
        %1294 = vmatmul.bf16.gmra.mxu0 %v536
        %v1295 = vpop.f32.mrf.mxu0
        %v1296 = vadd.f32 %v1238, %v1295
        %v1297 = vpop.f32.mrf.mxu0
        %v1298 = vadd.f32 %v1240, %v1297
        %1299 = vmatmul.bf16.gmra.mxu0 %v540
        %v1300 = vpop.f32.mrf.mxu0
        %v1301 = vadd.f32 %v1243, %v1300
        %v1302 = vpop.f32.mrf.mxu0
        %v1303 = vadd.f32 %v1245, %v1302
        %1304 = vmatmul.bf16.gmra.mxu0 %v544
        %v1305 = vpop.f32.mrf.mxu0
        %v1306 = vadd.f32 %v1248, %v1305
        %v1307 = vpop.f32.mrf.mxu0
        %v1308 = vadd.f32 %v1250, %v1307
        %1309 = vmatmul.bf16.gmra.mxu0 %v548
        %v1310 = vpop.f32.mrf.mxu0
        %v1311 = vadd.f32 %v1253, %v1310
        %v1312 = vpop.f32.mrf.mxu0
        %v1313 = vadd.f32 %v1255, %v1312
        %1314 = vmatmul.bf16.gmra.mxu0 %v552
        %v1315 = vpop.f32.mrf.mxu0
        %v1316 = vadd.f32 %v1258, %v1315
        %v1317 = vpop.f32.mrf.mxu0
        %v1318 = vadd.f32 %v1260, %v1317
        %1319 = vmatmul.bf16.gmra.mxu0 %v556
        %v1320 = vpop.f32.mrf.mxu0
        %v1321 = vadd.f32 %v1263, %v1320
        %v1322 = vpop.f32.mrf.mxu0
        %1323 = vdwg.mxu0
        %1324 = vmatpush.bf16.msra.mxu0 %v853
        %1325 = vmatpush.bf16.msra.mxu0 %v851
        %1326 = vmatpush.bf16.msra.mxu0 %v849
        %1327 = vmatpush.bf16.msra.mxu0 %v847
        %1328 = vmatpush.bf16.msra.mxu0 %v845
        %1329 = vmatpush.bf16.msra.mxu0 %v843
        %1330 = vmatpush.bf16.msra.mxu0 %v841
        %1331 = vmatpush.bf16.msra.mxu0 %v839
        %1332 = vmatmul.bf16.gmra.mxu0 %v521
        %v1333 = vpop.f32.mrf.mxu0
        %v1334 = vadd.f32 %v1276, %v1333
        %v1335 = vpop.f32.mrf.mxu0
        %v1336 = vadd.f32 %v1278, %v1335
        %1337 = vmatmul.bf16.gmra.mxu0 %v525
        %v1338 = vpop.f32.mrf.mxu0
        %v1339 = vadd.f32 %v1281, %v1338
        %v1340 = vpop.f32.mrf.mxu0
        %v1341 = vadd.f32 %v1283, %v1340
        %1342 = vmatmul.bf16.gmra.mxu0 %v529
        %v1343 = vpop.f32.mrf.mxu0
        %v1344 = vadd.f32 %v1286, %v1343
        %v1345 = vpop.f32.mrf.mxu0
        %v1346 = vadd.f32 %v1288, %v1345
        %1347 = vmatmul.bf16.gmra.mxu0 %v533
        %v1348 = vpop.f32.mrf.mxu0
        %v1349 = vadd.f32 %v1291, %v1348
        %v1350 = vpop.f32.mrf.mxu0
        %v1351 = vadd.f32 %v1293, %v1350
        %1352 = vmatmul.bf16.gmra.mxu0 %v537
        %v1353 = vpop.f32.mrf.mxu0
        %v1354 = vadd.f32 %v1296, %v1353
        %v1355 = vpop.f32.mrf.mxu0
        %v1356 = vadd.f32 %v1298, %v1355
        %1357 = vmatmul.bf16.gmra.mxu0 %v541
        %v1358 = vpop.f32.mrf.mxu0
        %v1359 = vadd.f32 %v1301, %v1358
        %v1360 = vpop.f32.mrf.mxu0
        %v1361 = vadd.f32 %v1303, %v1360
        %1362 = vmatmul.bf16.gmra.mxu0 %v545
        %v1363 = vpop.f32.mrf.mxu0
        %v1364 = vadd.f32 %v1306, %v1363
        %v1365 = vpop.f32.mrf.mxu0
        %v1366 = vadd.f32 %v1308, %v1365
        %1367 = vmatmul.bf16.gmra.mxu0 %v549
        %v1368 = vpop.f32.mrf.mxu0
        %v1369 = vadd.f32 %v1311, %v1368
        %v1370 = vpop.f32.mrf.mxu0
        %v1371 = vadd.f32 %v1313, %v1370
        %1372 = vmatmul.bf16.gmra.mxu0 %v553
        %v1373 = vpop.f32.mrf.mxu0
        %v1374 = vadd.f32 %v1316, %v1373
        %v1375 = vpop.f32.mrf.mxu0
        %v1376 = vadd.f32 %v1318, %v1375
        %1377 = vmatmul.bf16.gmra.mxu0 %v557
        %v1378 = vpop.f32.mrf.mxu0
        %v1379 = vadd.f32 %v1321, %v1378
        %v1380 = vpop.f32.mrf.mxu0
        %1381 = vdwg.mxu0
        %v1382 = vmul.f32 %v1102, 0.2
        %v1383 = vmul.f32 %v1334, 0.2
        %v1384 = vmul.f32 %v1104, 0.2
        %v1385 = vmul.f32 %v1336, 0.2
        %v1386 = vmul.f32 %v1107, 0.2
        %v1387 = vmul.f32 %v1339, 0.2
        %v1388 = vmul.f32 %v1109, 0.2
        %v1389 = vmul.f32 %v1341, 0.2
        %v1390 = vmul.f32 %v1112, 0.2
        %v1391 = vmul.f32 %v1344, 0.2
        %v1392 = vmul.f32 %v1114, 0.2
        %v1393 = vmul.f32 %v1346, 0.2
        %v1394 = vmul.f32 %v1117, 0.2
        %v1395 = vmul.f32 %v1349, 0.2
        %v1396 = vmul.f32 %v1119, 0.2
        %v1397 = vmul.f32 %v1351, 0.2
        %v1398 = vmul.f32 %v1122, 0.2
        %v1399 = vmul.f32 %v1354, 0.2
        %v1400 = vmul.f32 %v1124, 0.2
        %v1401 = vmul.f32 %v1356, 0.2
        %v1402 = vmul.f32 %v1127, 0.2
        %v1403 = vmul.f32 %v1359, 0.2
        %v1404 = vmul.f32 %v1129, 0.2
        %v1405 = vmul.f32 %v1361, 0.2
        %v1406 = vmul.f32 %v1132, 0.2
        %v1407 = vmul.f32 %v1364, 0.2
        %v1408 = vmul.f32 %v1134, 0.2
        %v1409 = vmul.f32 %v1366, 0.2
        %v1410 = vmul.f32 %v1137, 0.2
        %v1411 = vmul.f32 %v1369, 0.2
        %v1412 = vmul.f32 %v1139, 0.2
        %v1413 = vmul.f32 %v1371, 0.2
        %v1414 = vmul.f32 %v1142, 0.2
        %v1415 = vmul.f32 %v1374, 0.2
        %v1416 = vmul.f32 %v1144, 0.2
        %v1417 = vmul.f32 %v1376, 0.2
        %v1418 = vmul.f32 %v1147, 0.2
        %v1419 = vmul.f32 %v1379, 0.2
        %v1420 = vmax.f32 %v1102, %v1382
        %v1421 = vmax.f32 %v1334, %v1383
        %v1422 = vmax.f32 %v1104, %v1384
        %v1423 = vmax.f32 %v1336, %v1385
        %v1424 = vmax.f32 %v1107, %v1386
        %v1425 = vmax.f32 %v1339, %v1387
        %v1426 = vmax.f32 %v1109, %v1388
        %v1427 = vmax.f32 %v1341, %v1389
        %v1428 = vmax.f32 %v1112, %v1390
        %v1429 = vmax.f32 %v1344, %v1391
        %v1430 = vmax.f32 %v1114, %v1392
        %v1431 = vmax.f32 %v1346, %v1393
        %v1432 = vmax.f32 %v1117, %v1394
        %v1433 = vmax.f32 %v1349, %v1395
        %v1434 = vmax.f32 %v1119, %v1396
        %v1435 = vmax.f32 %v1351, %v1397
        %v1436 = vmax.f32 %v1122, %v1398
        %v1437 = vmax.f32 %v1354, %v1399
        %v1438 = vmax.f32 %v1124, %v1400
        %v1439 = vmax.f32 %v1356, %v1401
        %v1440 = vmax.f32 %v1127, %v1402
        %v1441 = vmax.f32 %v1359, %v1403
        %v1442 = vmax.f32 %v1129, %v1404
        %v1443 = vmax.f32 %v1361, %v1405
        %v1444 = vmax.f32 %v1132, %v1406
        %v1445 = vmax.f32 %v1364, %v1407
        %v1446 = vmax.f32 %v1134, %v1408
        %v1447 = vmax.f32 %v1366, %v1409
        %v1448 = vmax.f32 %v1137, %v1410
        %v1449 = vmax.f32 %v1369, %v1411
        %v1450 = vmax.f32 %v1139, %v1412
        %v1451 = vmax.f32 %v1371, %v1413
        %v1452 = vmax.f32 %v1142, %v1414
        %v1453 = vmax.f32 %v1374, %v1415
        %v1454 = vmax.f32 %v1144, %v1416
        %v1455 = vmax.f32 %v1376, %v1417
        %v1456 = vmax.f32 %v1147, %v1418
        %v1457 = vmax.f32 %v1379, %v1419
        %v1458 = vpack.c.bf16 %v1422, %v1420
        %v1459 = vpack.c.bf16 %v1423, %v1421
        %v1460 = vpack.c.bf16 %v1426, %v1424
        %v1461 = vpack.c.bf16 %v1427, %v1425
        %v1462 = vpack.c.bf16 %v1430, %v1428
        %v1463 = vpack.c.bf16 %v1431, %v1429
        %v1464 = vpack.c.bf16 %v1434, %v1432
        %v1465 = vpack.c.bf16 %v1435, %v1433
        %v1466 = vpack.c.bf16 %v1438, %v1436
        %v1467 = vpack.c.bf16 %v1439, %v1437
        %v1468 = vpack.c.bf16 %v1442, %v1440
        %v1469 = vpack.c.bf16 %v1443, %v1441
        %v1470 = vpack.c.bf16 %v1446, %v1444
        %v1471 = vpack.c.bf16 %v1447, %v1445
        %v1472 = vpack.c.bf16 %v1450, %v1448
        %v1473 = vpack.c.bf16 %v1451, %v1449
        %v1474 = vpack.c.bf16 %v1454, %v1452
        %v1475 = vpack.c.bf16 %v1455, %v1453
        %v1476 = vpack.c.bf16 %v1456, %v1456
        %v1477 = vpack.c.bf16 %v1457, %v1457
        %v1478 = vld [vmem:[#allocation8] sm:$0xff]
        %v1479 = vld [vmem:[#allocation8 + $0x8] sm:$0xff]
        %v1480 = vld [vmem:[#allocation8 + $0x10] sm:$0xff]
        %v1481 = vld [vmem:[#allocation8 + $0x18] sm:$0xff]
        %v1482 = vld [vmem:[#allocation8 + $0x20] sm:$0xff]
        %v1483 = vld [vmem:[#allocation8 + $0x28] sm:$0xff]
        %v1484 = vld [vmem:[#allocation8 + $0x30] sm:$0xff]
        %v1485 = vld [vmem:[#allocation8 + $0x38] sm:$0xff]
        %v1486 = vld [vmem:[#allocation8 + $0x40] sm:$0xff]
        %v1487 = vld [vmem:[#allocation8 + $0x48] sm:$0xff]
        %v1488 = vld [vmem:[#allocation8 + $0x50] sm:$0xff]
        %v1489 = vld [vmem:[#allocation8 + $0x58] sm:$0xff]
        %v1490 = vld [vmem:[#allocation8 + $0x60] sm:$0xff]
        %v1491 = vld [vmem:[#allocation8 + $0x68] sm:$0xff]
        %v1492 = vld [vmem:[#allocation8 + $0x70] sm:$0xff]
        %v1493 = vld [vmem:[#allocation8 + $0x78] sm:$0xff]
        %v1494 = vld [vmem:[#allocation8 + $0x80] sm:$0xff]
        %v1495 = vld [vmem:[#allocation8 + $0x88] sm:$0xff]
        %v1496 = vld [vmem:[#allocation8 + $0x90] sm:$0xff]
        %v1497 = vld [vmem:[#allocation8 + $0x98] sm:$0xff]
        %v1498 = vld [vmem:[#allocation8 + $0xa0] sm:$0xff]
        %v1499 = vld [vmem:[#allocation8 + $0xa8] sm:$0xff]
        %v1500 = vld [vmem:[#allocation8 + $0xb0] sm:$0xff]
        %v1501 = vld [vmem:[#allocation8 + $0xb8] sm:$0xff]
        %v1502 = vld [vmem:[#allocation8 + $0xc0] sm:$0xff]
        %v1503 = vld [vmem:[#allocation8 + $0xc8] sm:$0xff]
        %v1504 = vld [vmem:[#allocation8 + $0xd0] sm:$0xff]
        %v1505 = vld [vmem:[#allocation8 + $0xd8] sm:$0xff]
        %v1506 = vld [vmem:[#allocation8 + $0xe0] sm:$0xff]
        %v1507 = vld [vmem:[#allocation8 + $0xe8] sm:$0xff]
        %v1508 = vld [vmem:[#allocation8 + $0xf0] sm:$0xff]
        %v1509 = vld [vmem:[#allocation8 + $0xf8] sm:$0xff]
        %v1510 = vld [vmem:[%s4] sm:$0x3]
        %v1512 = vperm.slane %v1510, 0
        %v1513 = vperm.slane %v1510, 1
        %v1548 = vunpack.c.l.b16 %v1478
        %v1549 = vunpack.c.h.b16 %v1478
        %v1550 = vunpack.c.l.b16 %v1479
        %v1551 = vunpack.c.h.b16 %v1479
        %v1552 = vunpack.c.l.b16 %v1480
        %v1553 = vunpack.c.h.b16 %v1480
        %v1554 = vunpack.c.l.b16 %v1481
        %v1555 = vunpack.c.h.b16 %v1481
        %v1556 = vunpack.c.l.b16 %v1482
        %v1557 = vunpack.c.h.b16 %v1482
        %v1558 = vunpack.c.l.b16 %v1483
        %v1559 = vunpack.c.h.b16 %v1483
        %v1560 = vunpack.c.l.b16 %v1484
        %v1561 = vunpack.c.h.b16 %v1484
        %v1562 = vunpack.c.l.b16 %v1485
        %v1563 = vunpack.c.h.b16 %v1485
        %v1564 = vunpack.c.l.b16 %v1486
        %v1565 = vunpack.c.h.b16 %v1486
        %v1566 = vunpack.c.l.b16 %v1487
        %v1567 = vunpack.c.h.b16 %v1487
        %v1568 = vunpack.c.l.b16 %v1488
        %v1569 = vunpack.c.h.b16 %v1488
        %v1570 = vunpack.c.l.b16 %v1489
        %v1571 = vunpack.c.h.b16 %v1489
        %v1572 = vunpack.c.l.b16 %v1490
        %v1573 = vunpack.c.h.b16 %v1490
        %v1574 = vunpack.c.l.b16 %v1491
        %v1575 = vunpack.c.h.b16 %v1491
        %v1576 = vunpack.c.l.b16 %v1492
        %v1577 = vunpack.c.h.b16 %v1492
        %v1578 = vunpack.c.l.b16 %v1493
        %v1579 = vunpack.c.h.b16 %v1493
        %v1580 = vunpack.c.l.b16 %v1494
        %v1581 = vunpack.c.h.b16 %v1494
        %v1582 = vunpack.c.l.b16 %v1495
        %v1583 = vunpack.c.h.b16 %v1495
        %v1584 = vunpack.c.l.b16 %v1496
        %v1585 = vunpack.c.h.b16 %v1496
        %v1586 = vunpack.c.l.b16 %v1497
        %v1587 = vunpack.c.h.b16 %v1497
        %v1588 = vunpack.c.l.b16 %v1498
        %v1589 = vunpack.c.h.b16 %v1498
        %v1590 = vunpack.c.l.b16 %v1499
        %v1591 = vunpack.c.h.b16 %v1499
        %v1592 = vunpack.c.l.b16 %v1500
        %v1593 = vunpack.c.h.b16 %v1500
        %v1594 = vunpack.c.l.b16 %v1501
        %v1595 = vunpack.c.h.b16 %v1501
        %v1596 = vunpack.c.l.b16 %v1502
        %v1597 = vunpack.c.h.b16 %v1502
        %v1598 = vunpack.c.l.b16 %v1503
        %v1599 = vunpack.c.h.b16 %v1503
        %v1600 = vunpack.c.l.b16 %v1504
        %v1601 = vunpack.c.h.b16 %v1504
        %v1602 = vunpack.c.l.b16 %v1505
        %v1603 = vunpack.c.h.b16 %v1505
        %v1604 = vunpack.c.l.b16 %v1506
        %v1605 = vunpack.c.h.b16 %v1506
        %v1606 = vunpack.c.l.b16 %v1507
        %v1607 = vunpack.c.h.b16 %v1507
        %v1608 = vunpack.c.l.b16 %v1508
        %v1609 = vunpack.c.h.b16 %v1508
        %v1610 = vunpack.c.l.b16 %v1509
        %v1611 = vunpack.c.h.b16 %v1509
        %v1612 = vpack.c.b16 %v1550, %v1548
        %v1613 = vpack.c.b16 %v1551, %v1549
        %v1614 = vpack.c.b16 %v1554, %v1552
        %v1615 = vpack.c.b16 %v1555, %v1553
        %v1616 = vpack.c.b16 %v1558, %v1556
        %v1617 = vpack.c.b16 %v1559, %v1557
        %v1618 = vpack.c.b16 %v1562, %v1560
        %v1619 = vpack.c.b16 %v1563, %v1561
        %v1620 = vpack.c.b16 %v1566, %v1564
        %v1621 = vpack.c.b16 %v1567, %v1565
        %v1622 = vpack.c.b16 %v1570, %v1568
        %v1623 = vpack.c.b16 %v1571, %v1569
        %v1624 = vpack.c.b16 %v1574, %v1572
        %v1625 = vpack.c.b16 %v1575, %v1573
        %v1626 = vpack.c.b16 %v1578, %v1576
        %v1627 = vpack.c.b16 %v1579, %v1577
        %v1628 = vpack.c.b16 %v1582, %v1580
        %v1629 = vpack.c.b16 %v1583, %v1581
        %v1630 = vpack.c.b16 %v1586, %v1584
        %v1631 = vpack.c.b16 %v1587, %v1585
        %v1632 = vpack.c.b16 %v1590, %v1588
        %v1633 = vpack.c.b16 %v1591, %v1589
        %v1634 = vpack.c.b16 %v1594, %v1592
        %v1635 = vpack.c.b16 %v1595, %v1593
        %v1636 = vpack.c.b16 %v1598, %v1596
        %v1637 = vpack.c.b16 %v1599, %v1597
        %v1638 = vpack.c.b16 %v1602, %v1600
        %v1639 = vpack.c.b16 %v1603, %v1601
        %v1640 = vpack.c.b16 %v1606, %v1604
        %v1641 = vpack.c.b16 %v1607, %v1605
        %v1642 = vpack.c.b16 %v1610, %v1608
        %v1643 = vpack.c.b16 %v1611, %v1609
        %1676 = vmatpush.bf16.msra.mxu0 %v1626
        %1677 = vmatpush.bf16.msra.mxu0 %v1624
        %1678 = vmatpush.bf16.msra.mxu0 %v1622
        %1679 = vmatpush.bf16.msra.mxu0 %v1620
        %1680 = vmatpush.bf16.msra.mxu0 %v1618
        %1681 = vmatpush.bf16.msra.mxu0 %v1616
        %1682 = vmatpush.bf16.msra.mxu0 %v1614
        %1683 = vmatpush.bf16.msra.mxu0 %v1612
        %1684 = vmatmul.bf16.gmra.mxu0 %v1458
        %v1685 = vpop.f32.mrf.mxu0
        %v1686 = vadd.f32 %v1512, %v1685
        %v1687 = vpop.f32.mrf.mxu0
        %v1688 = vadd.f32 %v1512, %v1687
        %1689 = vmatmul.bf16.gmra.mxu0 %v1460
        %v1690 = vpop.f32.mrf.mxu0
        %v1691 = vadd.f32 %v1512, %v1690
        %v1692 = vpop.f32.mrf.mxu0
        %v1693 = vadd.f32 %v1512, %v1692
        %1694 = vmatmul.bf16.gmra.mxu0 %v1462
        %v1695 = vpop.f32.mrf.mxu0
        %v1696 = vadd.f32 %v1512, %v1695
        %v1697 = vpop.f32.mrf.mxu0
        %v1698 = vadd.f32 %v1512, %v1697
        %1699 = vmatmul.bf16.gmra.mxu0 %v1464
        %v1700 = vpop.f32.mrf.mxu0
        %v1701 = vadd.f32 %v1512, %v1700
        %v1702 = vpop.f32.mrf.mxu0
        %v1703 = vadd.f32 %v1512, %v1702
        %1704 = vmatmul.bf16.gmra.mxu0 %v1466
        %v1705 = vpop.f32.mrf.mxu0
        %v1706 = vadd.f32 %v1512, %v1705
        %v1707 = vpop.f32.mrf.mxu0
        %v1708 = vadd.f32 %v1512, %v1707
        %1709 = vmatmul.bf16.gmra.mxu0 %v1468
        %v1710 = vpop.f32.mrf.mxu0
        %v1711 = vadd.f32 %v1512, %v1710
        %v1712 = vpop.f32.mrf.mxu0
        %v1713 = vadd.f32 %v1512, %v1712
        %1714 = vmatmul.bf16.gmra.mxu0 %v1470
        %v1715 = vpop.f32.mrf.mxu0
        %v1716 = vadd.f32 %v1512, %v1715
        %v1717 = vpop.f32.mrf.mxu0
        %v1718 = vadd.f32 %v1512, %v1717
        %1719 = vmatmul.bf16.gmra.mxu0 %v1472
        %v1720 = vpop.f32.mrf.mxu0
        %v1721 = vadd.f32 %v1512, %v1720
        %v1722 = vpop.f32.mrf.mxu0
        %v1723 = vadd.f32 %v1512, %v1722
        %1724 = vmatmul.bf16.gmra.mxu0 %v1474
        %v1725 = vpop.f32.mrf.mxu0
        %v1726 = vadd.f32 %v1512, %v1725
        %v1727 = vpop.f32.mrf.mxu0
        %v1728 = vadd.f32 %v1512, %v1727
        %1729 = vmatmul.bf16.gmra.mxu0 %v1476
        %v1730 = vpop.f32.mrf.mxu0
        %v1731 = vadd.f32 %v1512, %v1730
        %v1732 = vpop.f32.mrf.mxu0
        %1733 = vdwg.mxu0
        %1734 = vmatpush.bf16.msra.mxu0 %v1642
        %1735 = vmatpush.bf16.msra.mxu0 %v1640
        %1736 = vmatpush.bf16.msra.mxu0 %v1638
        %1737 = vmatpush.bf16.msra.mxu0 %v1636
        %1738 = vmatpush.bf16.msra.mxu0 %v1634
        %1739 = vmatpush.bf16.msra.mxu0 %v1632
        %1740 = vmatpush.bf16.msra.mxu0 %v1630
        %1741 = vmatpush.bf16.msra.mxu0 %v1628
        %1742 = vmatmul.bf16.gmra.mxu0 %v1459
        %v1743 = vpop.f32.mrf.mxu0
        %v1744 = vadd.f32 %v1686, %v1743
        %v1745 = vpop.f32.mrf.mxu0
        %v1746 = vadd.f32 %v1688, %v1745
        %1747 = vmatmul.bf16.gmra.mxu0 %v1461
        %v1748 = vpop.f32.mrf.mxu0
        %v1749 = vadd.f32 %v1691, %v1748
        %v1750 = vpop.f32.mrf.mxu0
        %v1751 = vadd.f32 %v1693, %v1750
        %1752 = vmatmul.bf16.gmra.mxu0 %v1463
        %v1753 = vpop.f32.mrf.mxu0
        %v1754 = vadd.f32 %v1696, %v1753
        %v1755 = vpop.f32.mrf.mxu0
        %v1756 = vadd.f32 %v1698, %v1755
        %1757 = vmatmul.bf16.gmra.mxu0 %v1465
        %v1758 = vpop.f32.mrf.mxu0
        %v1759 = vadd.f32 %v1701, %v1758
        %v1760 = vpop.f32.mrf.mxu0
        %v1761 = vadd.f32 %v1703, %v1760
        %1762 = vmatmul.bf16.gmra.mxu0 %v1467
        %v1763 = vpop.f32.mrf.mxu0
        %v1764 = vadd.f32 %v1706, %v1763
        %v1765 = vpop.f32.mrf.mxu0
        %v1766 = vadd.f32 %v1708, %v1765
        %1767 = vmatmul.bf16.gmra.mxu0 %v1469
        %v1768 = vpop.f32.mrf.mxu0
        %v1769 = vadd.f32 %v1711, %v1768
        %v1770 = vpop.f32.mrf.mxu0
        %v1771 = vadd.f32 %v1713, %v1770
        %1772 = vmatmul.bf16.gmra.mxu0 %v1471
        %v1773 = vpop.f32.mrf.mxu0
        %v1774 = vadd.f32 %v1716, %v1773
        %v1775 = vpop.f32.mrf.mxu0
        %v1776 = vadd.f32 %v1718, %v1775
        %1777 = vmatmul.bf16.gmra.mxu0 %v1473
        %v1778 = vpop.f32.mrf.mxu0
        %v1779 = vadd.f32 %v1721, %v1778
        %v1780 = vpop.f32.mrf.mxu0
        %v1781 = vadd.f32 %v1723, %v1780
        %1782 = vmatmul.bf16.gmra.mxu0 %v1475
        %v1783 = vpop.f32.mrf.mxu0
        %v1784 = vadd.f32 %v1726, %v1783
        %v1785 = vpop.f32.mrf.mxu0
        %v1786 = vadd.f32 %v1728, %v1785
        %1787 = vmatmul.bf16.gmra.mxu0 %v1477
        %v1788 = vpop.f32.mrf.mxu0
        %v1789 = vadd.f32 %v1731, %v1788
        %v1790 = vpop.f32.mrf.mxu0
        %1791 = vdwg.mxu0
        %1792 = vmatpush.bf16.msra.mxu0 %v1627
        %1793 = vmatpush.bf16.msra.mxu0 %v1625
        %1794 = vmatpush.bf16.msra.mxu0 %v1623
        %1795 = vmatpush.bf16.msra.mxu0 %v1621
        %1796 = vmatpush.bf16.msra.mxu0 %v1619
        %1797 = vmatpush.bf16.msra.mxu0 %v1617
        %1798 = vmatpush.bf16.msra.mxu0 %v1615
        %1799 = vmatpush.bf16.msra.mxu0 %v1613
        %1800 = vmatmul.bf16.gmra.mxu0 %v1458
        %v1801 = vpop.f32.mrf.mxu0
        %v1802 = vadd.f32 %v1513, %v1801
        %v1803 = vpop.f32.mrf.mxu0
        %v1804 = vadd.f32 %v1513, %v1803
        %1805 = vmatmul.bf16.gmra.mxu0 %v1460
        %v1806 = vpop.f32.mrf.mxu0
        %v1807 = vadd.f32 %v1513, %v1806
        %v1808 = vpop.f32.mrf.mxu0
        %v1809 = vadd.f32 %v1513, %v1808
        %1810 = vmatmul.bf16.gmra.mxu0 %v1462
        %v1811 = vpop.f32.mrf.mxu0
        %v1812 = vadd.f32 %v1513, %v1811
        %v1813 = vpop.f32.mrf.mxu0
        %v1814 = vadd.f32 %v1513, %v1813
        %1815 = vmatmul.bf16.gmra.mxu0 %v1464
        %v1816 = vpop.f32.mrf.mxu0
        %v1817 = vadd.f32 %v1513, %v1816
        %v1818 = vpop.f32.mrf.mxu0
        %v1819 = vadd.f32 %v1513, %v1818
        %1820 = vmatmul.bf16.gmra.mxu0 %v1466
        %v1821 = vpop.f32.mrf.mxu0
        %v1822 = vadd.f32 %v1513, %v1821
        %v1823 = vpop.f32.mrf.mxu0
        %v1824 = vadd.f32 %v1513, %v1823
        %1825 = vmatmul.bf16.gmra.mxu0 %v1468
        %v1826 = vpop.f32.mrf.mxu0
        %v1827 = vadd.f32 %v1513, %v1826
        %v1828 = vpop.f32.mrf.mxu0
        %v1829 = vadd.f32 %v1513, %v1828
        %1830 = vmatmul.bf16.gmra.mxu0 %v1470
        %v1831 = vpop.f32.mrf.mxu0
        %v1832 = vadd.f32 %v1513, %v1831
        %v1833 = vpop.f32.mrf.mxu0
        %v1834 = vadd.f32 %v1513, %v1833
        %1835 = vmatmul.bf16.gmra.mxu0 %v1472
        %v1836 = vpop.f32.mrf.mxu0
        %v1837 = vadd.f32 %v1513, %v1836
        %v1838 = vpop.f32.mrf.mxu0
        %v1839 = vadd.f32 %v1513, %v1838
        %1840 = vmatmul.bf16.gmra.mxu0 %v1474
        %v1841 = vpop.f32.mrf.mxu0
        %v1842 = vadd.f32 %v1513, %v1841
        %v1843 = vpop.f32.mrf.mxu0
        %v1844 = vadd.f32 %v1513, %v1843
        %1845 = vmatmul.bf16.gmra.mxu0 %v1476
        %v1846 = vpop.f32.mrf.mxu0
        %v1847 = vadd.f32 %v1513, %v1846
        %v1848 = vpop.f32.mrf.mxu0
        %1849 = vdwg.mxu0
        %1850 = vmatpush.bf16.msra.mxu0 %v1643
        %1851 = vmatpush.bf16.msra.mxu0 %v1641
        %1852 = vmatpush.bf16.msra.mxu0 %v1639
        %1853 = vmatpush.bf16.msra.mxu0 %v1637
        %1854 = vmatpush.bf16.msra.mxu0 %v1635
        %1855 = vmatpush.bf16.msra.mxu0 %v1633
        %1856 = vmatpush.bf16.msra.mxu0 %v1631
        %1857 = vmatpush.bf16.msra.mxu0 %v1629
        %1858 = vmatmul.bf16.gmra.mxu0 %v1459
        %v1859 = vpop.f32.mrf.mxu0
        %v1860 = vadd.f32 %v1802, %v1859
        %v1861 = vpop.f32.mrf.mxu0
        %v1862 = vadd.f32 %v1804, %v1861
        %1863 = vmatmul.bf16.gmra.mxu0 %v1461
        %v1864 = vpop.f32.mrf.mxu0
        %v1865 = vadd.f32 %v1807, %v1864
        %v1866 = vpop.f32.mrf.mxu0
        %v1867 = vadd.f32 %v1809, %v1866
        %1868 = vmatmul.bf16.gmra.mxu0 %v1463
        %v1869 = vpop.f32.mrf.mxu0
        %v1870 = vadd.f32 %v1812, %v1869
        %v1871 = vpop.f32.mrf.mxu0
        %v1872 = vadd.f32 %v1814, %v1871
        %1873 = vmatmul.bf16.gmra.mxu0 %v1465
        %v1874 = vpop.f32.mrf.mxu0
        %v1875 = vadd.f32 %v1817, %v1874
        %v1876 = vpop.f32.mrf.mxu0
        %v1877 = vadd.f32 %v1819, %v1876
        %1878 = vmatmul.bf16.gmra.mxu0 %v1467
        %v1879 = vpop.f32.mrf.mxu0
        %v1880 = vadd.f32 %v1822, %v1879
        %v1881 = vpop.f32.mrf.mxu0
        %v1882 = vadd.f32 %v1824, %v1881
        %1883 = vmatmul.bf16.gmra.mxu0 %v1469
        %v1884 = vpop.f32.mrf.mxu0
        %v1885 = vadd.f32 %v1827, %v1884
        %v1886 = vpop.f32.mrf.mxu0
        %v1887 = vadd.f32 %v1829, %v1886
        %1888 = vmatmul.bf16.gmra.mxu0 %v1471
        %v1889 = vpop.f32.mrf.mxu0
        %v1890 = vadd.f32 %v1832, %v1889
        %v1891 = vpop.f32.mrf.mxu0
        %v1892 = vadd.f32 %v1834, %v1891
        %1893 = vmatmul.bf16.gmra.mxu0 %v1473
        %v1894 = vpop.f32.mrf.mxu0
        %v1895 = vadd.f32 %v1837, %v1894
        %v1896 = vpop.f32.mrf.mxu0
        %v1897 = vadd.f32 %v1839, %v1896
        %1898 = vmatmul.bf16.gmra.mxu0 %v1475
        %v1899 = vpop.f32.mrf.mxu0
        %v1900 = vadd.f32 %v1842, %v1899
        %v1901 = vpop.f32.mrf.mxu0
        %v1902 = vadd.f32 %v1844, %v1901
        %1903 = vmatmul.bf16.gmra.mxu0 %v1477
        %v1904 = vpop.f32.mrf.mxu0
        %v1905 = vadd.f32 %v1847, %v1904
        %v1906 = vpop.f32.mrf.mxu0
        %1907 = vdwg.mxu0
        %v1908 = vmax.f32 %v1744, 0.0
        %v1909 = vmax.f32 %v1860, 0.0
        %v1910 = vmax.f32 %v1746, 0.0
        %v1911 = vmax.f32 %v1862, 0.0
        %v1912 = vmax.f32 %v1749, 0.0
        %v1913 = vmax.f32 %v1865, 0.0
        %v1914 = vmax.f32 %v1751, 0.0
        %v1915 = vmax.f32 %v1867, 0.0
        %v1916 = vmax.f32 %v1754, 0.0
        %v1917 = vmax.f32 %v1870, 0.0
        %v1918 = vmax.f32 %v1756, 0.0
        %v1919 = vmax.f32 %v1872, 0.0
        %v1920 = vmax.f32 %v1759, 0.0
        %v1921 = vmax.f32 %v1875, 0.0
        %v1922 = vmax.f32 %v1761, 0.0
        %v1923 = vmax.f32 %v1877, 0.0
        %v1924 = vmax.f32 %v1764, 0.0
        %v1925 = vmax.f32 %v1880, 0.0
        %v1926 = vmax.f32 %v1766, 0.0
        %v1927 = vmax.f32 %v1882, 0.0
        %v1928 = vmax.f32 %v1769, 0.0
        %v1929 = vmax.f32 %v1885, 0.0
        %v1930 = vmax.f32 %v1771, 0.0
        %v1931 = vmax.f32 %v1887, 0.0
        %v1932 = vmax.f32 %v1774, 0.0
        %v1933 = vmax.f32 %v1890, 0.0
        %v1934 = vmax.f32 %v1776, 0.0
        %v1935 = vmax.f32 %v1892, 0.0
        %v1936 = vmax.f32 %v1779, 0.0
        %v1937 = vmax.f32 %v1895, 0.0
        %v1938 = vmax.f32 %v1781, 0.0
        %v1939 = vmax.f32 %v1897, 0.0
        %v1940 = vmax.f32 %v1784, 0.0
        %v1941 = vmax.f32 %v1900, 0.0
        %v1942 = vmax.f32 %v1786, 0.0
        %v1943 = vmax.f32 %v1902, 0.0
        %v1944 = vmax.f32 %v1789, 0.0
        %v1945 = vmax.f32 %v1905, 0.0
        %1946 = vst [vmem:[%s293] sm:$0xff] %v1908
        %1947 = vst [vmem:[%s293 + $0x8] sm:$0xff] %v1909
        %1948 = vst [vmem:[%s293 + $0x10] sm:$0xff] %v1910
        %1949 = vst [vmem:[%s293 + $0x18] sm:$0xff] %v1911
        %1950 = vst [vmem:[%s293 + $0x20] sm:$0xff] %v1912
        %1951 = vst [vmem:[%s293 + $0x28] sm:$0xff] %v1913
        %1952 = vst [vmem:[%s293 + $0x30] sm:$0xff] %v1914
        %1953 = vst [vmem:[%s293 + $0x38] sm:$0xff] %v1915
        %1954 = vst [vmem:[%s293 + $0x40] sm:$0xff] %v1916
        %1955 = vst [vmem:[%s293 + $0x48] sm:$0xff] %v1917
        %1956 = vst [vmem:[%s293 + $0x50] sm:$0xff] %v1918
        %1957 = vst [vmem:[%s293 + $0x58] sm:$0xff] %v1919
        %1958 = vst [vmem:[%s293 + $0x60] sm:$0xff] %v1920
        %1959 = vst [vmem:[%s293 + $0x68] sm:$0xff] %v1921
        %1960 = vst [vmem:[%s293 + $0x70] sm:$0xff] %v1922
        %1961 = vst [vmem:[%s293 + $0x78] sm:$0xff] %v1923
        %1962 = vst [vmem:[%s293 + $0x80] sm:$0xff] %v1924
        %1963 = vst [vmem:[%s293 + $0x88] sm:$0xff] %v1925
        %1964 = vst [vmem:[%s293 + $0x90] sm:$0xff] %v1926
        %1965 = vst [vmem:[%s293 + $0x98] sm:$0xff] %v1927
        %1966 = vst [vmem:[%s293 + $0xa0] sm:$0xff] %v1928
        %1967 = vst [vmem:[%s293 + $0xa8] sm:$0xff] %v1929
        %1968 = vst [vmem:[%s293 + $0xb0] sm:$0xff] %v1930
        %1969 = vst [vmem:[%s293 + $0xb8] sm:$0xff] %v1931
        %1970 = vst [vmem:[%s293 + $0xc0] sm:$0xff] %v1932
        %1971 = vst [vmem:[%s293 + $0xc8] sm:$0xff] %v1933
        %1972 = vst [vmem:[%s293 + $0xd0] sm:$0xff] %v1934
        %1973 = vst [vmem:[%s293 + $0xd8] sm:$0xff] %v1935
        %1974 = vst [vmem:[%s293 + $0xe0] sm:$0xff] %v1936
        %1975 = vst [vmem:[%s293 + $0xe8] sm:$0xff] %v1937
        %1976 = vst [vmem:[%s293 + $0xf0] sm:$0xff] %v1938
        %1977 = vst [vmem:[%s293 + $0xf8] sm:$0xff] %v1939
        %1978 = vst [vmem:[%s293 + $0x100] sm:$0xff] %v1940
        %1979 = vst [vmem:[%s293 + $0x108] sm:$0xff] %v1941
        %1980 = vst [vmem:[%s293 + $0x110] sm:$0xff] %v1942
        %1981 = vst [vmem:[%s293 + $0x118] sm:$0xff] %v1943
        %1982 = vst [vmem:[%s293 + $0x120] sm:$0xff] %v1944
        %1983 = vst [vmem:[%s293 + $0x128] sm:$0xff] %v1945
        %s1984 = sand.u32 %s142, 1
        %s1985 = scalar_lea.sflag [#allocation4], %s1984
        %s1986 = sand.u32 %s142, 1
        %s1987 = smul.addr %s1986, 304
        %s1988 = scalar_lea.vmem [#allocation10], %s1987
        // Predicated region
        $region57: #{tpu_custom_call.1} parent=39 // pred_check
          %p1989 = pneg %p152
        $region58: #{tpu_custom_call.1} parent=39 // pred_check_branch
          %1991 = sbr.rel (%p1989) target = $region60
        $region59: #{tpu_custom_call.1} parent=39 // pred_region
          %s1992 = smul.u32 19, %s24
          %1994 = vsyncadd %s1985, 0
          %s1995 = smul.addr %s1992, 2
          %s1996 = smul.addr %s1995, 8
          %s1997 = scalar_lea.hbm %s5, %s1996
          %s1998 = sshll.u32 %s1988, 4
          %s1999 = int_to_ptr.vmem [resolvable:$true] %s1998
          %s2000 = sshll.u32 %s1997, 4
          %s2001 = int_to_ptr.hbm [resolvable:$true] %s2000
          %2006 = dma.vmem_to_hbm [thread:$0]  %s1999, 4864, %s2001, %s1985, 256, 256, 16
        $region60: #{tpu_custom_call.1} parent=39 // pred_fallthru
          _
      $region40: #{tpu_custom_call.1} parent=5 // pred_fallthru
        _
      %p2007 = scmp.le.s32.totalorder 2, %s19
      // Predicated region
      $region61: #{tpu_custom_call.1} parent=5 // pred_check
        %p2008 = pneg %p2007
      $region62: #{tpu_custom_call.1} parent=5 // pred_check_branch
        %2010 = sbr.rel (%p2008) target = $region64
      $region63: #{tpu_custom_call.1} parent=5 // pred_region
        %s2011 = ssub.s32 %s19, 2
        // Predicated region
        $region65: #{tpu_custom_call.1} parent=63 // pred_check
          %p2012 = pneg %p158
        $region66: #{tpu_custom_call.1} parent=63 // pred_check_branch
          %2014 = sbr.rel (%p2012) target = $region68
        $region67: #{tpu_custom_call.1} parent=63 // pred_region
          %s2015 = sand.u32 %s143, 1
          %s2016 = scalar_lea.sflag [#allocation4], %s2015
          %s2017 = sand.u32 %s143, 1
          %s2018 = smul.addr %s2017, 304
          %s2019 = scalar_lea.vmem [#allocation10], %s2018
          %2021 = dma.done %s2016, 4864
        $region68: #{tpu_custom_call.1} parent=63 // pred_fallthru
          _
      $region64: #{tpu_custom_call.1} parent=5 // pred_fallthru
        _
    $region6: #{tpu_custom_call.1} parent=1 // loop_footer
      %s23 = sadd.s32 1, %s19
    $region7: #{tpu_custom_call.1} parent=1 // loop_footer_branch
      %18 = sbr.rel target = $region3
    $region8: #{tpu_custom_call.1} parent=1 // loop_exit
      _
    %2022 = vsyncpa [#allocation3], 1
    %s2023 = scalar_lea.sflag [#allocation3], 1
    %2024 = vsyncpa %s2023, 1
    %2025 = vsyncpa [#allocation6], 1
    %2026 = vsyncpa [#allocation9], 1
    %2027 = vsyncpa [#allocation4], 1
    %s2028 = scalar_lea.sflag [#allocation4], 1
    %2029 = vsyncpa %s2028, 1

</llo_original>
